<compile_context>
chip_gen: v7x
topology: tpu7x:2x2x1
jax: 0.10.0
libtpu: 0.0.40
codegen_flags: <defaults>
</compile_context>

<pallas_src>
import math

import jax
import jax.numpy as jnp
from jax.experimental import pallas as pl
from jax.experimental.pallas import tpu as pltpu


def _layernorm_f32(x, gamma, beta, eps=1e-6):
    # Module uses nn.LayerNorm(d_embedding, eps=1e-06).
    mu = jnp.mean(x, axis=-1, keepdims=True)
    xc = x - mu
    var = jnp.mean(xc * xc, axis=-1, keepdims=True)
    return xc * jax.lax.rsqrt(var + eps) * gamma + beta


def _make_encoder_kernel(num_heads, d_model, seq_len, block_batch, need_weights):
    H, D, S, Bt = num_heads, d_model, seq_len, block_batch
    hd = D // H
    scale = 1.0 / math.sqrt(hd)

    def kernel(x_ref,                    # (Bt*S, D)   flattened rows of the block
               w_in_ref, b_in_ref,       # (D, 3D), (1, 3D)   pre-transposed
               w_out_ref, b_out_ref,     # (D, D),  (1, D)    pre-transposed
               w1_ref, b1_ref,           # (D, Dff), (1, Dff) pre-transposed
               w2_ref, b2_ref,           # (Dff, D), (1, D)   pre-transposed
               g1_ref, beta1_ref,        # (1, D), (1, D)
               g2_ref, beta2_ref,        # (1, D), (1, D)
               out_ref,                  # (Bt*S, D)
               *attn_refs):              # optionally ((Bt, S, S),)
        x = x_ref[...].astype(jnp.float32)                       # (Bt*S, D)

        # ---- fused QKV projection: one MXU matmul for all rows / all heads ----
        qkv = jnp.dot(x, w_in_ref[...],
                      preferred_element_type=jnp.float32) + b_in_ref[...]

        # ---- per-head attention, batched over the Bt sequences in the block ----
        attn_acc = None
        w_sum = None
        for h in range(H):
            qh = qkv[:, h * hd:(h + 1) * hd].reshape(Bt, S, hd)
            kh = qkv[:, D + h * hd:D + (h + 1) * hd].reshape(Bt, S, hd)
            vh = qkv[:, 2 * D + h * hd:2 * D + (h + 1) * hd].reshape(Bt, S, hd)

            s = jnp.einsum('bqd,bkd->bqk', qh, kh,
                           preferred_element_type=jnp.float32) * scale
            s = s - jnp.max(s, axis=-1, keepdims=True)
            p = jnp.exp(s)
            denom = jnp.sum(p, axis=-1, keepdims=True)
            r = pl.reciprocal(denom, approx=True)   # EUP slot (otherwise idle)
            r = r * (2.0 - denom * r)               # one Newton step -> exact parity
            p = p * r
            if need_weights:
                w_sum = p if w_sum is None else w_sum + p

            oh = jnp.einsum('bqk,bkd->bqd', p, vh,
                            preferred_element_type=jnp.float32)
            # Accumulate the output projection head-by-head (no lane concat).
            part = jnp.dot(oh.reshape(Bt * S, hd),
                           w_out_ref[h * hd:(h + 1) * hd, :],
                           preferred_element_type=jnp.float32)
            attn_acc = part if attn_acc is None else attn_acc + part
        attn_out = attn_acc + b_out_ref[...]

        if need_weights:
            attn_refs[0][...] = (w_sum * (1.0 / H)).astype(attn_refs[0].dtype)

        # TODO(synk): dropout implemented as identity (inference/eval mode);
        # training-mode RNG dropout is not implemented.
        h1 = _layernorm_f32(x + attn_out, g1_ref[...], beta1_ref[...])

        # ---- feed-forward: Linear -> ReLU -> Linear, residual, LayerNorm2 ----
        f = jnp.dot(h1, w1_ref[...], preferred_element_type=jnp.float32) + b1_ref[...]
        f = jnp.maximum(f, 0.0)
        f = jnp.dot(f, w2_ref[...], preferred_element_type=jnp.float32) + b2_ref[...]
        h2 = _layernorm_f32(h1 + f, g2_ref[...], beta2_ref[...])

        out_ref[...] = h2.astype(out_ref.dtype)

    return kernel


def mha_encoder_block_forward(x, params, num_heads, *, need_weights=True,
                              block_rows_target=256):
    """x: [B, S, D]. Returns (out [B, S, D], attn_weights [B, S, S] or None)."""
    B, S, D = x.shape
    assert D % num_heads == 0, "d_embedding must be divisible by num_heads"
    d_ff = params['w1'].shape[0]
    f32 = jnp.float32

    # Batch-block size: largest divisor of B whose row count Bt*S stays within
    # the MXU-friendly target (>=128/256 rows when B allows it).
    max_bt = max(1, block_rows_target // S)
    bt = 1
    for cand in range(1, B + 1):
        if B % cand == 0 and cand <= max_bt:
            bt = cand
    grid = (B // bt,)

    # Pre-transpose weights once in the wrapper so the MXU sees (K, N) operands
    # (no per-step in-kernel transpose; weights stay VMEM-resident across steps).
    w_in_t = jnp.asarray(params['w_in'], f32).T      # (D, 3D)
    w_out_t = jnp.asarray(params['w_out'], f32).T    # (D, D)
    w1_t = jnp.asarray(params['w1'], f32).T          # (D, Dff)
    w2_t = jnp.asarray(params['w2'], f32).T          # (Dff, D)

    def row(p):
        return jnp.asarray(p, f32).reshape(1, -1)

    b_in, b_out = row(params['b_in']), row(params['b_out'])
    b1, b2 = row(params['b1']), row(params['b2'])
    g1, be1 = row(params['g1']), row(params['beta1'])
    g2, be2 = row(params['g2']), row(params['beta2'])

    # Weights use the same block every grid step -> resident in VMEM.
    def resident(arr):
        nd = arr.ndim
        return pl.BlockSpec(arr.shape, lambda i, _nd=nd: (0,) * _nd)

    in_specs = [pl.BlockSpec((bt * S, D), lambda i: (i, 0))] + [
        resident(a) for a in (w_in_t, b_in, w_out_t, b_out,
                              w1_t, b1, w2_t, b2, g1, be1, g2, be2)]

    out_shapes = [jax.ShapeDtypeStruct((B * S, D), x.dtype)]
    out_specs = [pl.BlockSpec((bt * S, D), lambda i: (i, 0))]
    if need_weights:
        out_shapes.append(jax.ShapeDtypeStruct((B, S, S), f32))
        out_specs.append(pl.BlockSpec((bt, S, S), lambda i: (i, 0, 0)))

    # Advisory cost estimate so XLA can schedule/overlap around the fused call.
    weight_bytes = sum(int(a.size) * 4 for a in (w_in_t, w_out_t, w1_t, w2_t))
    flops = (2 * B * S * D * (3 * D)       # qkv
             + 4 * B * S * S * D           # scores + attn@v
             + 2 * B * S * D * D           # out proj
             + 4 * B * S * D * d_ff)       # FFN
    bytes_accessed = ((x.size + B * S * D) * x.dtype.itemsize
                      + weight_bytes
                      + (B * S * S * 4 if need_weights else 0))
    cost = pl.CostEstimate(flops=int(flops),
                           transcendentals=int(B * num_heads * S * S),
                           bytes_accessed=int(bytes_accessed))

    kernel = _make_encoder_kernel(num_heads, D, S, bt, need_weights)
    results = pl.pallas_call(
        kernel,
        out_shape=tuple(out_shapes),
        grid_spec=pl.GridSpec(grid=grid, in_specs=in_specs,
                              out_specs=tuple(out_specs)),
        compiler_params=pltpu.CompilerParams(
            dimension_semantics=("parallel",),       # shard batch blocks across TCs
            vmem_limit_bytes=64 * 1024 * 1024,       # fits v7x physical VMEM
        ),
        cost_estimate=cost,
    )(x.reshape(B * S, D), w_in_t, b_in, w_out_t, b_out,
      w1_t, b1, w2_t, b2, g1, be1, g2, be2)

    out2d = results[0]
    attn = results[1] if need_weights else None
    return out2d.reshape(B, S, D), attn


def _ref_forward(x, params, num_heads):
    """Pure-JAX reference matching torch.nn.MultiheadAttention + the block."""
    B, S, D = x.shape
    H = num_heads
    hd = D // H
    qkv = jnp.einsum('bsd,ed->bse', x, params['w_in']) + params['b_in']
    q, k, v = jnp.split(qkv, 3, axis=-1)

    def to_heads(t):
        return t.reshape(B, S, H, hd).transpose(0, 2, 1, 3)

    qh, kh, vh = to_heads(q), to_heads(k), to_heads(v)
    scores = jnp.einsum('bhqd,bhkd->bhqk', qh, kh) / math.sqrt(hd)
    p = jax.nn.softmax(scores, axis=-1)
    ao = jnp.einsum('bhqk,bhkd->bhqd', p, vh).transpose(0, 2, 1, 3).reshape(B, S, D)
    attn_out = ao @ params['w_out'].T + params['b_out']
    attn_w = p.mean(axis=1)

    def ln(y, g, b):
        mu = y.mean(-1, keepdims=True)
        var = ((y - mu) ** 2).mean(-1, keepdims=True)
        return (y - mu) / jnp.sqrt(var + 1e-6) * g + b

    h1 = ln(x + attn_out, params['g1'], params['beta1'])
    f = jnp.maximum(h1 @ params['w1'].T + params['b1'], 0.0) @ params['w2'].T + params['b2']
    h2 = ln(h1 + f, params['g2'], params['beta2'])
    return h2, attn_w


if __name__ == "__main__":
    # Small shapes consistent with the module: batch=2, seq=8, d_embedding=32,
    # num_heads=4, d_ff=64.
    B, S, D, H, d_ff = 2, 8, 32, 4, 64

    key = jax.random.PRNGKey(0)
    ks = jax.random.split(key, 13)
    sc = 0.1
    params = dict(
        w_in=sc * jax.random.normal(ks[0], (3 * D, D), jnp.float32),
        b_in=sc * jax.random.normal(ks[1], (3 * D,), jnp.float32),
        w_out=sc * jax.random.normal(ks[2], (D, D), jnp.float32),
        b_out=sc * jax.random.normal(ks[3], (D,), jnp.float32),
        w1=sc * jax.random.normal(ks[4], (d_ff, D), jnp.float32),
        b1=sc * jax.random.normal(ks[5], (d_ff,), jnp.float32),
        w2=sc * jax.random.normal(ks[6], (D, d_ff), jnp.float32),
        b2=sc * jax.random.normal(ks[7], (D,), jnp.float32),
        g1=1.0 + 0.05 * jax.random.normal(ks[8], (D,), jnp.float32),
        beta1=0.05 * jax.random.normal(ks[9], (D,), jnp.float32),
        g2=1.0 + 0.05 * jax.random.normal(ks[10], (D,), jnp.float32),
        beta2=0.05 * jax.random.normal(ks[11], (D,), jnp.float32),
    )
    x = jax.random.normal(ks[12], (B, S, D), jnp.float32)

    # Full forward (module semantics: returns attention weights too).
    out, attn_w = mha_encoder_block_forward(x, params, H, need_weights=True)
    out = jax.block_until_ready(out)
    attn_w = jax.block_until_ready(attn_w)

    # Fast path that skips the O(S^2) attention-weights writeback.
    out_nw, _ = mha_encoder_block_forward(x, params, H, need_weights=False)
    out_nw = jax.block_until_ready(out_nw)

    ref_out, ref_w = _ref_forward(x, params, H)

    assert out.shape == (B, S, D)
    assert attn_w.shape == (B, S, S)
    assert jnp.allclose(out, ref_out, atol=1e-4, rtol=1e-4), \
        float(jnp.max(jnp.abs(out - ref_out)))
    assert jnp.allclose(attn_w, ref_w, atol=1e-4, rtol=1e-4), \
        float(jnp.max(jnp.abs(attn_w - ref_w)))
    assert jnp.allclose(out_nw, ref_out, atol=1e-4, rtol=1e-4), \
        float(jnp.max(jnp.abs(out_nw - ref_out)))

    print("KERNEL_OK")
</pallas_src>

<mosaic_0001>
module attributes {stable_mosaic.version = 11 : i64} {
  func.func @kernel(%arg0: i32, %arg1: memref<16x32xf32, #tpu.memory_space<vmem>>, %arg2: memref<32x96xf32, #tpu.memory_space<vmem>>, %arg3: memref<1x96xf32, #tpu.memory_space<vmem>>, %arg4: memref<32x32xf32, #tpu.memory_space<vmem>>, %arg5: memref<1x32xf32, #tpu.memory_space<vmem>>, %arg6: memref<32x64xf32, #tpu.memory_space<vmem>>, %arg7: memref<1x64xf32, #tpu.memory_space<vmem>>, %arg8: memref<64x32xf32, #tpu.memory_space<vmem>>, %arg9: memref<1x32xf32, #tpu.memory_space<vmem>>, %arg10: memref<1x32xf32, #tpu.memory_space<vmem>>, %arg11: memref<1x32xf32, #tpu.memory_space<vmem>>, %arg12: memref<1x32xf32, #tpu.memory_space<vmem>>, %arg13: memref<1x32xf32, #tpu.memory_space<vmem>>, %arg14: memref<16x32xf32, #tpu.memory_space<vmem>>, %arg15: memref<2x8x8xf32, #tpu.memory_space<vmem>>) attributes {dimension_semantics = [#tpu.dimension_semantics<parallel>], iteration_bounds = array<i64: 1>, scalar_prefetch = 0 : i64, scratch_operands = 0 : i64, tpu.core_type = #tpu.core_type<tc>, window_params = [{transform_indices = @transform_0, window_bounds = array<i64: 16, 32>}, {pipeline_mode = #tpu.pipeline_mode<synchronous>, transform_indices = @transform_1, window_bounds = array<i64: 32, 96>}, {pipeline_mode = #tpu.pipeline_mode<synchronous>, transform_indices = @transform_2, window_bounds = array<i64: 1, 96>}, {pipeline_mode = #tpu.pipeline_mode<synchronous>, transform_indices = @transform_3, window_bounds = array<i64: 32, 32>}, {pipeline_mode = #tpu.pipeline_mode<synchronous>, transform_indices = @transform_4, window_bounds = array<i64: 1, 32>}, {pipeline_mode = #tpu.pipeline_mode<synchronous>, transform_indices = @transform_5, window_bounds = array<i64: 32, 64>}, {pipeline_mode = #tpu.pipeline_mode<synchronous>, transform_indices = @transform_6, window_bounds = array<i64: 1, 64>}, {pipeline_mode = #tpu.pipeline_mode<synchronous>, transform_indices = @transform_7, window_bounds = array<i64: 64, 32>}, {pipeline_mode = #tpu.pipeline_mode<synchronous>, transform_indices = @transform_8, window_bounds = array<i64: 1, 32>}, {pipeline_mode = #tpu.pipeline_mode<synchronous>, transform_indices = @transform_9, window_bounds = array<i64: 1, 32>}, {pipeline_mode = #tpu.pipeline_mode<synchronous>, transform_indices = @transform_10, window_bounds = array<i64: 1, 32>}, {pipeline_mode = #tpu.pipeline_mode<synchronous>, transform_indices = @transform_11, window_bounds = array<i64: 1, 32>}, {pipeline_mode = #tpu.pipeline_mode<synchronous>, transform_indices = @transform_12, window_bounds = array<i64: 1, 32>}, {transform_indices = @transform_13, window_bounds = array<i64: 16, 32>}, {transform_indices = @transform_14, window_bounds = array<i64: 2, 8, 8>}]} {
    %c0 = arith.constant 0 : index
    %c0_0 = arith.constant 0 : index
    %0 = vector.load %arg1[%c0, %c0_0] : memref<16x32xf32, #tpu.memory_space<vmem>>, vector<16x32xf32>
    %c0_1 = arith.constant 0 : index
    %c0_2 = arith.constant 0 : index
    %1 = vector.load %arg2[%c0_1, %c0_2] : memref<32x96xf32, #tpu.memory_space<vmem>>, vector<32x96xf32>
    %cst = arith.constant dense<0.000000e+00> : vector<16x96xf32>
    %2 = tpu.matmul %0, %1, %cst {dimension_numbers = #tpu.dot_dimension_numbers<[1], [0], [0], [1], [0, 0, 1, 1], [], []>} : vector<16x32xf32>, vector<32x96xf32>, vector<16x96xf32> -> vector<16x96xf32>
    %c0_3 = arith.constant 0 : index
    %c0_4 = arith.constant 0 : index
    %3 = vector.load %arg3[%c0_3, %c0_4] : memref<1x96xf32, #tpu.memory_space<vmem>>, vector<1x96xf32>
    %4 = vector.broadcast %3 : vector<1x96xf32> to vector<16x96xf32>
    %5 = arith.addf %2, %4 : vector<16x96xf32>
    %6 = vector.extract_strided_slice %5 {offsets = [0, 0], sizes = [16, 8], strides = [1, 1]} : vector<16x96xf32> to vector<16x8xf32>
    %7 = vector.shape_cast %6 : vector<16x8xf32> to vector<2x8x8xf32>
    %8 = vector.extract_strided_slice %5 {offsets = [0, 32], sizes = [16, 8], strides = [1, 1]} : vector<16x96xf32> to vector<16x8xf32>
    %9 = vector.shape_cast %8 : vector<16x8xf32> to vector<2x8x8xf32>
    %10 = vector.extract_strided_slice %5 {offsets = [0, 64], sizes = [16, 8], strides = [1, 1]} : vector<16x96xf32> to vector<16x8xf32>
    %11 = vector.shape_cast %10 : vector<16x8xf32> to vector<2x8x8xf32>
    "tpu.trace_start"() <{level = 10 : i32, message = "bqd,bkd->bqk"}> : () -> ()
    %cst_5 = arith.constant dense<0.000000e+00> : vector<2x8x8xf32>
    %12 = tpu.matmul %7, %9, %cst_5 {dimension_numbers = #tpu.dot_dimension_numbers<[2], [2], [1], [1], [0, 0, 0, 1, 1, 1], [0], [0]>} : vector<2x8x8xf32>, vector<2x8x8xf32>, vector<2x8x8xf32> -> vector<2x8x8xf32>
    "tpu.trace_stop"() : () -> ()
    %cst_6 = arith.constant 0.353553385 : f32
    %13 = vector.broadcast %cst_6 : f32 to vector<2x8x8xf32>
    %14 = arith.mulf %12, %13 : vector<2x8x8xf32>
    %cst_7 = arith.constant dense<0xFF800000> : vector<2x8xf32>
    %15 = vector.multi_reduction <maximumf>, %14, %cst_7 [2] : vector<2x8x8xf32> to vector<2x8xf32>
    %16 = vector.shape_cast %15 : vector<2x8xf32> to vector<2x8x1xf32>
    %17 = vector.broadcast %16 : vector<2x8x1xf32> to vector<2x8x8xf32>
    %18 = arith.subf %14, %17 : vector<2x8x8xf32>
    %19 = math.exp %18 : vector<2x8x8xf32>
    %cst_8 = arith.constant dense<0.000000e+00> : vector<2x8xf32>
    %20 = vector.multi_reduction <add>, %19, %cst_8 [2] : vector<2x8x8xf32> to vector<2x8xf32>
    %21 = vector.shape_cast %20 : vector<2x8xf32> to vector<2x8x1xf32>
    %22 = tpu.reciprocal %21 {approx = true} : vector<2x8x1xf32> -> vector<2x8x1xf32>
    %23 = arith.mulf %21, %22 : vector<2x8x1xf32>
    %cst_9 = arith.constant 2.000000e+00 : f32
    %24 = vector.broadcast %cst_9 : f32 to vector<2x8x1xf32>
    %25 = arith.subf %24, %23 : vector<2x8x1xf32>
    %26 = arith.mulf %22, %25 : vector<2x8x1xf32>
    %27 = vector.broadcast %26 : vector<2x8x1xf32> to vector<2x8x8xf32>
    %28 = arith.mulf %19, %27 : vector<2x8x8xf32>
    "tpu.trace_start"() <{level = 10 : i32, message = "bqk,bkd->bqd"}> : () -> ()
    %cst_10 = arith.constant dense<0.000000e+00> : vector<2x8x8xf32>
    %29 = tpu.matmul %28, %11, %cst_10 {dimension_numbers = #tpu.dot_dimension_numbers<[2], [1], [1], [2], [0, 0, 0, 1, 1, 2], [0], [0]>} : vector<2x8x8xf32>, vector<2x8x8xf32>, vector<2x8x8xf32> -> vector<2x8x8xf32>
    "tpu.trace_stop"() : () -> ()
    %30 = vector.shape_cast %29 : vector<2x8x8xf32> to vector<16x8xf32>
    %c0_11 = arith.constant 0 : index
    %c0_12 = arith.constant 0 : index
    %31 = vector.load %arg4[%c0_11, %c0_12] : memref<32x32xf32, #tpu.memory_space<vmem>>, vector<8x32xf32>
    %cst_13 = arith.constant dense<0.000000e+00> : vector<16x32xf32>
    %32 = tpu.matmul %30, %31, %cst_13 {dimension_numbers = #tpu.dot_dimension_numbers<[1], [0], [0], [1], [0, 0, 1, 1], [], []>} : vector<16x8xf32>, vector<8x32xf32>, vector<16x32xf32> -> vector<16x32xf32>
    %33 = vector.extract_strided_slice %5 {offsets = [0, 8], sizes = [16, 8], strides = [1, 1]} : vector<16x96xf32> to vector<16x8xf32>
    %34 = vector.shape_cast %33 : vector<16x8xf32> to vector<2x8x8xf32>
    %35 = vector.extract_strided_slice %5 {offsets = [0, 40], sizes = [16, 8], strides = [1, 1]} : vector<16x96xf32> to vector<16x8xf32>
    %36 = vector.shape_cast %35 : vector<16x8xf32> to vector<2x8x8xf32>
    %37 = vector.extract_strided_slice %5 {offsets = [0, 72], sizes = [16, 8], strides = [1, 1]} : vector<16x96xf32> to vector<16x8xf32>
    %38 = vector.shape_cast %37 : vector<16x8xf32> to vector<2x8x8xf32>
    "tpu.trace_start"() <{level = 10 : i32, message = "bqd,bkd->bqk"}> : () -> ()
    %cst_14 = arith.constant dense<0.000000e+00> : vector<2x8x8xf32>
    %39 = tpu.matmul %34, %36, %cst_14 {dimension_numbers = #tpu.dot_dimension_numbers<[2], [2], [1], [1], [0, 0, 0, 1, 1, 1], [0], [0]>} : vector<2x8x8xf32>, vector<2x8x8xf32>, vector<2x8x8xf32> -> vector<2x8x8xf32>
    "tpu.trace_stop"() : () -> ()
    %cst_15 = arith.constant 0.353553385 : f32
    %40 = vector.broadcast %cst_15 : f32 to vector<2x8x8xf32>
    %41 = arith.mulf %39, %40 : vector<2x8x8xf32>
    %cst_16 = arith.constant dense<0xFF800000> : vector<2x8xf32>
    %42 = vector.multi_reduction <maximumf>, %41, %cst_16 [2] : vector<2x8x8xf32> to vector<2x8xf32>
    %43 = vector.shape_cast %42 : vector<2x8xf32> to vector<2x8x1xf32>
    %44 = vector.broadcast %43 : vector<2x8x1xf32> to vector<2x8x8xf32>
    %45 = arith.subf %41, %44 : vector<2x8x8xf32>
    %46 = math.exp %45 : vector<2x8x8xf32>
    %cst_17 = arith.constant dense<0.000000e+00> : vector<2x8xf32>
    %47 = vector.multi_reduction <add>, %46, %cst_17 [2] : vector<2x8x8xf32> to vector<2x8xf32>
    %48 = vector.shape_cast %47 : vector<2x8xf32> to vector<2x8x1xf32>
    %49 = tpu.reciprocal %48 {approx = true} : vector<2x8x1xf32> -> vector<2x8x1xf32>
    %50 = arith.mulf %48, %49 : vector<2x8x1xf32>
    %cst_18 = arith.constant 2.000000e+00 : f32
    %51 = vector.broadcast %cst_18 : f32 to vector<2x8x1xf32>
    %52 = arith.subf %51, %50 : vector<2x8x1xf32>
    %53 = arith.mulf %49, %52 : vector<2x8x1xf32>
    %54 = vector.broadcast %53 : vector<2x8x1xf32> to vector<2x8x8xf32>
    %55 = arith.mulf %46, %54 : vector<2x8x8xf32>
    %56 = arith.addf %28, %55 : vector<2x8x8xf32>
    "tpu.trace_start"() <{level = 10 : i32, message = "bqk,bkd->bqd"}> : () -> ()
    %cst_19 = arith.constant dense<0.000000e+00> : vector<2x8x8xf32>
    %57 = tpu.matmul %55, %38, %cst_19 {dimension_numbers = #tpu.dot_dimension_numbers<[2], [1], [1], [2], [0, 0, 0, 1, 1, 2], [0], [0]>} : vector<2x8x8xf32>, vector<2x8x8xf32>, vector<2x8x8xf32> -> vector<2x8x8xf32>
    "tpu.trace_stop"() : () -> ()
    %58 = vector.shape_cast %57 : vector<2x8x8xf32> to vector<16x8xf32>
    %c8 = arith.constant 8 : index
    %c0_20 = arith.constant 0 : index
    %59 = vector.load %arg4[%c8, %c0_20] : memref<32x32xf32, #tpu.memory_space<vmem>>, vector<8x32xf32>
    %cst_21 = arith.constant dense<0.000000e+00> : vector<16x32xf32>
    %60 = tpu.matmul %58, %59, %cst_21 {dimension_numbers = #tpu.dot_dimension_numbers<[1], [0], [0], [1], [0, 0, 1, 1], [], []>} : vector<16x8xf32>, vector<8x32xf32>, vector<16x32xf32> -> vector<16x32xf32>
    %61 = arith.addf %32, %60 : vector<16x32xf32>
    %62 = vector.extract_strided_slice %5 {offsets = [0, 16], sizes = [16, 8], strides = [1, 1]} : vector<16x96xf32> to vector<16x8xf32>
    %63 = vector.shape_cast %62 : vector<16x8xf32> to vector<2x8x8xf32>
    %64 = vector.extract_strided_slice %5 {offsets = [0, 48], sizes = [16, 8], strides = [1, 1]} : vector<16x96xf32> to vector<16x8xf32>
    %65 = vector.shape_cast %64 : vector<16x8xf32> to vector<2x8x8xf32>
    %66 = vector.extract_strided_slice %5 {offsets = [0, 80], sizes = [16, 8], strides = [1, 1]} : vector<16x96xf32> to vector<16x8xf32>
    %67 = vector.shape_cast %66 : vector<16x8xf32> to vector<2x8x8xf32>
    "tpu.trace_start"() <{level = 10 : i32, message = "bqd,bkd->bqk"}> : () -> ()
    %cst_22 = arith.constant dense<0.000000e+00> : vector<2x8x8xf32>
    %68 = tpu.matmul %63, %65, %cst_22 {dimension_numbers = #tpu.dot_dimension_numbers<[2], [2], [1], [1], [0, 0, 0, 1, 1, 1], [0], [0]>} : vector<2x8x8xf32>, vector<2x8x8xf32>, vector<2x8x8xf32> -> vector<2x8x8xf32>
    "tpu.trace_stop"() : () -> ()
    %cst_23 = arith.constant 0.353553385 : f32
    %69 = vector.broadcast %cst_23 : f32 to vector<2x8x8xf32>
    %70 = arith.mulf %68, %69 : vector<2x8x8xf32>
    %cst_24 = arith.constant dense<0xFF800000> : vector<2x8xf32>
    %71 = vector.multi_reduction <maximumf>, %70, %cst_24 [2] : vector<2x8x8xf32> to vector<2x8xf32>
    %72 = vector.shape_cast %71 : vector<2x8xf32> to vector<2x8x1xf32>
    %73 = vector.broadcast %72 : vector<2x8x1xf32> to vector<2x8x8xf32>
    %74 = arith.subf %70, %73 : vector<2x8x8xf32>
    %75 = math.exp %74 : vector<2x8x8xf32>
    %cst_25 = arith.constant dense<0.000000e+00> : vector<2x8xf32>
    %76 = vector.multi_reduction <add>, %75, %cst_25 [2] : vector<2x8x8xf32> to vector<2x8xf32>
    %77 = vector.shape_cast %76 : vector<2x8xf32> to vector<2x8x1xf32>
    %78 = tpu.reciprocal %77 {approx = true} : vector<2x8x1xf32> -> vector<2x8x1xf32>
    %79 = arith.mulf %77, %78 : vector<2x8x1xf32>
    %cst_26 = arith.constant 2.000000e+00 : f32
    %80 = vector.broadcast %cst_26 : f32 to vector<2x8x1xf32>
    %81 = arith.subf %80, %79 : vector<2x8x1xf32>
    %82 = arith.mulf %78, %81 : vector<2x8x1xf32>
    %83 = vector.broadcast %82 : vector<2x8x1xf32> to vector<2x8x8xf32>
    %84 = arith.mulf %75, %83 : vector<2x8x8xf32>
    %85 = arith.addf %56, %84 : vector<2x8x8xf32>
    "tpu.trace_start"() <{level = 10 : i32, message = "bqk,bkd->bqd"}> : () -> ()
    %cst_27 = arith.constant dense<0.000000e+00> : vector<2x8x8xf32>
    %86 = tpu.matmul %84, %67, %cst_27 {dimension_numbers = #tpu.dot_dimension_numbers<[2], [1], [1], [2], [0, 0, 0, 1, 1, 2], [0], [0]>} : vector<2x8x8xf32>, vector<2x8x8xf32>, vector<2x8x8xf32> -> vector<2x8x8xf32>
    "tpu.trace_stop"() : () -> ()
    %87 = vector.shape_cast %86 : vector<2x8x8xf32> to vector<16x8xf32>
    %c16 = arith.constant 16 : index
    %c0_28 = arith.constant 0 : index
    %88 = vector.load %arg4[%c16, %c0_28] : memref<32x32xf32, #tpu.memory_space<vmem>>, vector<8x32xf32>
    %cst_29 = arith.constant dense<0.000000e+00> : vector<16x32xf32>
    %89 = tpu.matmul %87, %88, %cst_29 {dimension_numbers = #tpu.dot_dimension_numbers<[1], [0], [0], [1], [0, 0, 1, 1], [], []>} : vector<16x8xf32>, vector<8x32xf32>, vector<16x32xf32> -> vector<16x32xf32>
    %90 = arith.addf %61, %89 : vector<16x32xf32>
    %91 = vector.extract_strided_slice %5 {offsets = [0, 24], sizes = [16, 8], strides = [1, 1]} : vector<16x96xf32> to vector<16x8xf32>
    %92 = vector.shape_cast %91 : vector<16x8xf32> to vector<2x8x8xf32>
    %93 = vector.extract_strided_slice %5 {offsets = [0, 56], sizes = [16, 8], strides = [1, 1]} : vector<16x96xf32> to vector<16x8xf32>
    %94 = vector.shape_cast %93 : vector<16x8xf32> to vector<2x8x8xf32>
    %95 = vector.extract_strided_slice %5 {offsets = [0, 88], sizes = [16, 8], strides = [1, 1]} : vector<16x96xf32> to vector<16x8xf32>
    %96 = vector.shape_cast %95 : vector<16x8xf32> to vector<2x8x8xf32>
    "tpu.trace_start"() <{level = 10 : i32, message = "bqd,bkd->bqk"}> : () -> ()
    %cst_30 = arith.constant dense<0.000000e+00> : vector<2x8x8xf32>
    %97 = tpu.matmul %92, %94, %cst_30 {dimension_numbers = #tpu.dot_dimension_numbers<[2], [2], [1], [1], [0, 0, 0, 1, 1, 1], [0], [0]>} : vector<2x8x8xf32>, vector<2x8x8xf32>, vector<2x8x8xf32> -> vector<2x8x8xf32>
    "tpu.trace_stop"() : () -> ()
    %cst_31 = arith.constant 0.353553385 : f32
    %98 = vector.broadcast %cst_31 : f32 to vector<2x8x8xf32>
    %99 = arith.mulf %97, %98 : vector<2x8x8xf32>
    %cst_32 = arith.constant dense<0xFF800000> : vector<2x8xf32>
    %100 = vector.multi_reduction <maximumf>, %99, %cst_32 [2] : vector<2x8x8xf32> to vector<2x8xf32>
    %101 = vector.shape_cast %100 : vector<2x8xf32> to vector<2x8x1xf32>
    %102 = vector.broadcast %101 : vector<2x8x1xf32> to vector<2x8x8xf32>
    %103 = arith.subf %99, %102 : vector<2x8x8xf32>
    %104 = math.exp %103 : vector<2x8x8xf32>
    %cst_33 = arith.constant dense<0.000000e+00> : vector<2x8xf32>
    %105 = vector.multi_reduction <add>, %104, %cst_33 [2] : vector<2x8x8xf32> to vector<2x8xf32>
    %106 = vector.shape_cast %105 : vector<2x8xf32> to vector<2x8x1xf32>
    %107 = tpu.reciprocal %106 {approx = true} : vector<2x8x1xf32> -> vector<2x8x1xf32>
    %108 = arith.mulf %106, %107 : vector<2x8x1xf32>
    %cst_34 = arith.constant 2.000000e+00 : f32
    %109 = vector.broadcast %cst_34 : f32 to vector<2x8x1xf32>
    %110 = arith.subf %109, %108 : vector<2x8x1xf32>
    %111 = arith.mulf %107, %110 : vector<2x8x1xf32>
    %112 = vector.broadcast %111 : vector<2x8x1xf32> to vector<2x8x8xf32>
    %113 = arith.mulf %104, %112 : vector<2x8x8xf32>
    %114 = arith.addf %85, %113 : vector<2x8x8xf32>
    "tpu.trace_start"() <{level = 10 : i32, message = "bqk,bkd->bqd"}> : () -> ()
    %cst_35 = arith.constant dense<0.000000e+00> : vector<2x8x8xf32>
    %115 = tpu.matmul %113, %96, %cst_35 {dimension_numbers = #tpu.dot_dimension_numbers<[2], [1], [1], [2], [0, 0, 0, 1, 1, 2], [0], [0]>} : vector<2x8x8xf32>, vector<2x8x8xf32>, vector<2x8x8xf32> -> vector<2x8x8xf32>
    "tpu.trace_stop"() : () -> ()
    %116 = vector.shape_cast %115 : vector<2x8x8xf32> to vector<16x8xf32>
    %c24 = arith.constant 24 : index
    %c0_36 = arith.constant 0 : index
    %117 = vector.load %arg4[%c24, %c0_36] : memref<32x32xf32, #tpu.memory_space<vmem>>, vector<8x32xf32>
    %cst_37 = arith.constant dense<0.000000e+00> : vector<16x32xf32>
    %118 = tpu.matmul %116, %117, %cst_37 {dimension_numbers = #tpu.dot_dimension_numbers<[1], [0], [0], [1], [0, 0, 1, 1], [], []>} : vector<16x8xf32>, vector<8x32xf32>, vector<16x32xf32> -> vector<16x32xf32>
    %119 = arith.addf %90, %118 : vector<16x32xf32>
    %c0_38 = arith.constant 0 : index
    %c0_39 = arith.constant 0 : index
    %120 = vector.load %arg5[%c0_38, %c0_39] : memref<1x32xf32, #tpu.memory_space<vmem>>, vector<1x32xf32>
    %121 = vector.broadcast %120 : vector<1x32xf32> to vector<16x32xf32>
    %122 = arith.addf %119, %121 : vector<16x32xf32>
    %cst_40 = arith.constant 2.500000e-01 : f32
    %123 = vector.broadcast %cst_40 : f32 to vector<2x8x8xf32>
    %124 = arith.mulf %114, %123 : vector<2x8x8xf32>
    %c0_41 = arith.constant 0 : index
    %c0_42 = arith.constant 0 : index
    %c0_43 = arith.constant 0 : index
    %125 = vector.load %arg15[%c0_41, %c0_42, %c0_43] : memref<2x8x8xf32, #tpu.memory_space<vmem>>, vector<2x8x8xf32>
    tpu.vector_store %arg15[%c0_41, %c0_42, %c0_43], %124 {strides = array<i32>} : memref<2x8x8xf32, #tpu.memory_space<vmem>>, vector<2x8x8xf32>,
    %126 = arith.addf %0, %122 : vector<16x32xf32>
    %c0_44 = arith.constant 0 : index
    %c0_45 = arith.constant 0 : index
    %127 = vector.load %arg10[%c0_44, %c0_45] : memref<1x32xf32, #tpu.memory_space<vmem>>, vector<1x32xf32>
    %c0_46 = arith.constant 0 : index
    %c0_47 = arith.constant 0 : index
    %128 = vector.load %arg11[%c0_46, %c0_47] : memref<1x32xf32, #tpu.memory_space<vmem>>, vector<1x32xf32>
    %cst_48 = arith.constant dense<0.000000e+00> : vector<16xf32>
    %129 = vector.multi_reduction <add>, %126, %cst_48 [1] : vector<16x32xf32> to vector<16xf32>
    %130 = vector.shape_cast %129 : vector<16xf32> to vector<16x1xf32>
    %cst_49 = arith.constant 3.200000e+01 : f32
    %131 = vector.broadcast %cst_49 : f32 to vector<16x1xf32>
    %132 = arith.divf %130, %131 : vector<16x1xf32>
    %133 = vector.broadcast %132 : vector<16x1xf32> to vector<16x32xf32>
    %134 = arith.subf %126, %133 : vector<16x32xf32>
    %135 = arith.mulf %134, %134 : vector<16x32xf32>
    %cst_50 = arith.constant dense<0.000000e+00> : vector<16xf32>
    %136 = vector.multi_reduction <add>, %135, %cst_50 [1] : vector<16x32xf32> to vector<16xf32>
    %137 = vector.shape_cast %136 : vector<16xf32> to vector<16x1xf32>
    %cst_51 = arith.constant 3.200000e+01 : f32
    %138 = vector.broadcast %cst_51 : f32 to vector<16x1xf32>
    %139 = arith.divf %137, %138 : vector<16x1xf32>
    %cst_52 = arith.constant 9.99999997E-7 : f32
    %140 = vector.broadcast %cst_52 : f32 to vector<16x1xf32>
    %141 = arith.addf %139, %140 : vector<16x1xf32>
    %142 = math.rsqrt %141 : vector<16x1xf32>
    %143 = vector.broadcast %142 : vector<16x1xf32> to vector<16x32xf32>
    %144 = arith.mulf %134, %143 : vector<16x32xf32>
    %145 = vector.broadcast %127 : vector<1x32xf32> to vector<16x32xf32>
    %146 = arith.mulf %144, %145 : vector<16x32xf32>
    %147 = vector.broadcast %128 : vector<1x32xf32> to vector<16x32xf32>
    %148 = arith.addf %146, %147 : vector<16x32xf32>
    %c0_53 = arith.constant 0 : index
    %c0_54 = arith.constant 0 : index
    %149 = vector.load %arg6[%c0_53, %c0_54] : memref<32x64xf32, #tpu.memory_space<vmem>>, vector<32x64xf32>
    %cst_55 = arith.constant dense<0.000000e+00> : vector<16x64xf32>
    %150 = tpu.matmul %148, %149, %cst_55 {dimension_numbers = #tpu.dot_dimension_numbers<[1], [0], [0], [1], [0, 0, 1, 1], [], []>} : vector<16x32xf32>, vector<32x64xf32>, vector<16x64xf32> -> vector<16x64xf32>
    %c0_56 = arith.constant 0 : index
    %c0_57 = arith.constant 0 : index
    %151 = vector.load %arg7[%c0_56, %c0_57] : memref<1x64xf32, #tpu.memory_space<vmem>>, vector<1x64xf32>
    %152 = vector.broadcast %151 : vector<1x64xf32> to vector<16x64xf32>
    %153 = arith.addf %150, %152 : vector<16x64xf32>
    %cst_58 = arith.constant 0.000000e+00 : f32
    %154 = vector.broadcast %cst_58 : f32 to vector<16x64xf32>
    %155 = arith.maximumf %153, %154 : vector<16x64xf32>
    %c0_59 = arith.constant 0 : index
    %c0_60 = arith.constant 0 : index
    %156 = vector.load %arg8[%c0_59, %c0_60] : memref<64x32xf32, #tpu.memory_space<vmem>>, vector<64x32xf32>
    %cst_61 = arith.constant dense<0.000000e+00> : vector<16x32xf32>
    %157 = tpu.matmul %155, %156, %cst_61 {dimension_numbers = #tpu.dot_dimension_numbers<[1], [0], [0], [1], [0, 0, 1, 1], [], []>} : vector<16x64xf32>, vector<64x32xf32>, vector<16x32xf32> -> vector<16x32xf32>
    %c0_62 = arith.constant 0 : index
    %c0_63 = arith.constant 0 : index
    %158 = vector.load %arg9[%c0_62, %c0_63] : memref<1x32xf32, #tpu.memory_space<vmem>>, vector<1x32xf32>
    %159 = vector.broadcast %158 : vector<1x32xf32> to vector<16x32xf32>
    %160 = arith.addf %157, %159 : vector<16x32xf32>
    %161 = arith.addf %148, %160 : vector<16x32xf32>
    %c0_64 = arith.constant 0 : index
    %c0_65 = arith.constant 0 : index
    %162 = vector.load %arg12[%c0_64, %c0_65] : memref<1x32xf32, #tpu.memory_space<vmem>>, vector<1x32xf32>
    %c0_66 = arith.constant 0 : index
    %c0_67 = arith.constant 0 : index
    %163 = vector.load %arg13[%c0_66, %c0_67] : memref<1x32xf32, #tpu.memory_space<vmem>>, vector<1x32xf32>
    %cst_68 = arith.constant dense<0.000000e+00> : vector<16xf32>
    %164 = vector.multi_reduction <add>, %161, %cst_68 [1] : vector<16x32xf32> to vector<16xf32>
    %165 = vector.shape_cast %164 : vector<16xf32> to vector<16x1xf32>
    %cst_69 = arith.constant 3.200000e+01 : f32
    %166 = vector.broadcast %cst_69 : f32 to vector<16x1xf32>
    %167 = arith.divf %165, %166 : vector<16x1xf32>
    %168 = vector.broadcast %167 : vector<16x1xf32> to vector<16x32xf32>
    %169 = arith.subf %161, %168 : vector<16x32xf32>
    %170 = arith.mulf %169, %169 : vector<16x32xf32>
    %cst_70 = arith.constant dense<0.000000e+00> : vector<16xf32>
    %171 = vector.multi_reduction <add>, %170, %cst_70 [1] : vector<16x32xf32> to vector<16xf32>
    %172 = vector.shape_cast %171 : vector<16xf32> to vector<16x1xf32>
    %cst_71 = arith.constant 3.200000e+01 : f32
    %173 = vector.broadcast %cst_71 : f32 to vector<16x1xf32>
    %174 = arith.divf %172, %173 : vector<16x1xf32>
    %cst_72 = arith.constant 9.99999997E-7 : f32
    %175 = vector.broadcast %cst_72 : f32 to vector<16x1xf32>
    %176 = arith.addf %174, %175 : vector<16x1xf32>
    %177 = math.rsqrt %176 : vector<16x1xf32>
    %178 = vector.broadcast %177 : vector<16x1xf32> to vector<16x32xf32>
    %179 = arith.mulf %169, %178 : vector<16x32xf32>
    %180 = vector.broadcast %162 : vector<1x32xf32> to vector<16x32xf32>
    %181 = arith.mulf %179, %180 : vector<16x32xf32>
    %182 = vector.broadcast %163 : vector<1x32xf32> to vector<16x32xf32>
    %183 = arith.addf %181, %182 : vector<16x32xf32>
    %c0_73 = arith.constant 0 : index
    %c0_74 = arith.constant 0 : index
    %184 = vector.load %arg14[%c0_73, %c0_74] : memref<16x32xf32, #tpu.memory_space<vmem>>, vector<16x32xf32>
    tpu.vector_store %arg14[%c0_73, %c0_74], %183 {strides = array<i32>} : memref<16x32xf32, #tpu.memory_space<vmem>>, vector<16x32xf32>,
    return
  }
  func.func @transform_0(%arg0: i32) -> (i32, i32) {
    %c0_i32 = arith.constant 0 : i32
    %c0_i32_0 = arith.constant 0 : i32
    return %arg0, %c0_i32 : i32, i32
  }
  func.func @transform_1(%arg0: i32) -> (i32, i32) {
    %c0_i32 = arith.constant 0 : i32
    %c0_i32_0 = arith.constant 0 : i32
    %c0_i32_1 = arith.constant 0 : i32
    return %c0_i32, %c0_i32_0 : i32, i32
  }
  func.func @transform_2(%arg0: i32) -> (i32, i32) {
    %c0_i32 = arith.constant 0 : i32
    %c0_i32_0 = arith.constant 0 : i32
    %c0_i32_1 = arith.constant 0 : i32
    return %c0_i32, %c0_i32_0 : i32, i32
  }
  func.func @transform_3(%arg0: i32) -> (i32, i32) {
    %c0_i32 = arith.constant 0 : i32
    %c0_i32_0 = arith.constant 0 : i32
    %c0_i32_1 = arith.constant 0 : i32
    return %c0_i32, %c0_i32_0 : i32, i32
  }
  func.func @transform_4(%arg0: i32) -> (i32, i32) {
    %c0_i32 = arith.constant 0 : i32
    %c0_i32_0 = arith.constant 0 : i32
    %c0_i32_1 = arith.constant 0 : i32
    return %c0_i32, %c0_i32_0 : i32, i32
  }
  func.func @transform_5(%arg0: i32) -> (i32, i32) {
    %c0_i32 = arith.constant 0 : i32
    %c0_i32_0 = arith.constant 0 : i32
    %c0_i32_1 = arith.constant 0 : i32
    return %c0_i32, %c0_i32_0 : i32, i32
  }
  func.func @transform_6(%arg0: i32) -> (i32, i32) {
    %c0_i32 = arith.constant 0 : i32
    %c0_i32_0 = arith.constant 0 : i32
    %c0_i32_1 = arith.constant 0 : i32
    return %c0_i32, %c0_i32_0 : i32, i32
  }
  func.func @transform_7(%arg0: i32) -> (i32, i32) {
    %c0_i32 = arith.constant 0 : i32
    %c0_i32_0 = arith.constant 0 : i32
    %c0_i32_1 = arith.constant 0 : i32
    return %c0_i32, %c0_i32_0 : i32, i32
  }
  func.func @transform_8(%arg0: i32) -> (i32, i32) {
    %c0_i32 = arith.constant 0 : i32
    %c0_i32_0 = arith.constant 0 : i32
    %c0_i32_1 = arith.constant 0 : i32
    return %c0_i32, %c0_i32_0 : i32, i32
  }
  func.func @transform_9(%arg0: i32) -> (i32, i32) {
    %c0_i32 = arith.constant 0 : i32
    %c0_i32_0 = arith.constant 0 : i32
    %c0_i32_1 = arith.constant 0 : i32
    return %c0_i32, %c0_i32_0 : i32, i32
  }
  func.func @transform_10(%arg0: i32) -> (i32, i32) {
    %c0_i32 = arith.constant 0 : i32
    %c0_i32_0 = arith.constant 0 : i32
    %c0_i32_1 = arith.constant 0 : i32
    return %c0_i32, %c0_i32_0 : i32, i32
  }
  func.func @transform_11(%arg0: i32) -> (i32, i32) {
    %c0_i32 = arith.constant 0 : i32
    %c0_i32_0 = arith.constant 0 : i32
    %c0_i32_1 = arith.constant 0 : i32
    return %c0_i32, %c0_i32_0 : i32, i32
  }
  func.func @transform_12(%arg0: i32) -> (i32, i32) {
    %c0_i32 = arith.constant 0 : i32
    %c0_i32_0 = arith.constant 0 : i32
    %c0_i32_1 = arith.constant 0 : i32
    return %c0_i32, %c0_i32_0 : i32, i32
  }
  func.func @transform_13(%arg0: i32) -> (i32, i32) {
    %c0_i32 = arith.constant 0 : i32
    %c0_i32_0 = arith.constant 0 : i32
    return %arg0, %c0_i32 : i32, i32
  }
  func.func @transform_14(%arg0: i32) -> (i32, i32, i32) {
    %c0_i32 = arith.constant 0 : i32
    %c0_i32_0 = arith.constant 0 : i32
    %c0_i32_1 = arith.constant 0 : i32
    return %arg0, %c0_i32, %c0_i32_0 : i32, i32, i32
  }
}

</mosaic_0001>

<llo_original>
// kernel: tpu_custom_call.1
$region0: #{tpu_custom_call.1}
  #allocation0 [shape = 'u32[]', space=smem, size = 0x4, offset = 0x4, fixed_abs, tag = 'smem constant byte address 0x4 - core index']
  #allocation1 [shape = 'u32[144,128]{1,0:T(1,128)}', space=vmem, size = 0x12000, scoped, tag = 'internal scratch']
  %s0 = inlined_call_operand.hbm [shape: f32[16,32], index: 0, kind: input, shape index: {}]
  %s1 = inlined_call_operand.hbm [shape: f32[32,96], index: 1, kind: input, shape index: {}]
  %s2 = inlined_call_operand.hbm [shape: f32[1,96], index: 2, kind: input, shape index: {}]
  %s3 = inlined_call_operand.hbm [shape: f32[32,32], index: 3, kind: input, shape index: {}]
  %s4 = inlined_call_operand.hbm [shape: f32[1,32], index: 4, kind: input, shape index: {}]
  %s5 = inlined_call_operand.hbm [shape: f32[32,64], index: 5, kind: input, shape index: {}]
  %s6 = inlined_call_operand.hbm [shape: f32[1,64], index: 6, kind: input, shape index: {}]
  %s7 = inlined_call_operand.hbm [shape: f32[64,32], index: 7, kind: input, shape index: {}]
  %s8 = inlined_call_operand.hbm [shape: f32[1,32], index: 8, kind: input, shape index: {}]
  %s9 = inlined_call_operand.hbm [shape: f32[1,32], index: 9, kind: input, shape index: {}]
  %s10 = inlined_call_operand.hbm [shape: f32[1,32], index: 10, kind: input, shape index: {}]
  %s11 = inlined_call_operand.hbm [shape: f32[1,32], index: 11, kind: input, shape index: {}]
  %s12 = inlined_call_operand.hbm [shape: f32[1,32], index: 12, kind: input, shape index: {}]
  %s13 = inlined_call_operand.hbm [shape: f32[16,32], index: 13, kind: output, shape index: {0}]
  %s14 = inlined_call_operand.hbm [shape: f32[2,8,8], index: 14, kind: output, shape index: {1}]
  %15 = xla_tuple %s13, %s14
  %s16 = sld [smem:[#allocation0]]
  $region122: #{tpu_custom_call.1} parent=0
    _
  %s18 = ssub.s32 1, %s16
  %s19 = scalar_select 0, %s18, %s16
  $region1: #{tpu_custom_call.1} parent=0
    #allocation2 [shape = 'u8[8192]{0}', space=vmem, size = 0x2000, scoped, tag = 'input window, operand 0, single buffered']
    #allocation3 [shape = 's32[1]{0}', space=sflag, size = 0x4, scoped, tag = 'scoped memory for tpu_custom_call.1']
    #allocation4 [shape = 's32[1]{0}', space=sflag, size = 0x4, scoped, tag = 'scoped memory for tpu_custom_call.1']
    #allocation5 [shape = 'u8[16384]{0}', space=vmem, size = 0x4000, scoped, tag = 'input window, operand 1, single buffered']
    #allocation6 [shape = 's32[1]{0}', space=sflag, size = 0x4, scoped, tag = 'scoped memory for tpu_custom_call.1']
    #allocation7 [shape = 'u8[512]{0}', space=vmem, size = 0x400, scoped, tag = 'input window, operand 2, single buffered']
    #allocation8 [shape = 'u8[16384]{0}', space=vmem, size = 0x4000, scoped, tag = 'input window, operand 3, single buffered']
    #allocation9 [shape = 's32[1]{0}', space=sflag, size = 0x4, scoped, tag = 'scoped memory for tpu_custom_call.1']
    #allocation10 [shape = 'u8[512]{0}', space=vmem, size = 0x400, scoped, tag = 'input window, operand 4, single buffered']
    #allocation11 [shape = 'u8[16384]{0}', space=vmem, size = 0x4000, scoped, tag = 'input window, operand 5, single buffered']
    #allocation12 [shape = 's32[1]{0}', space=sflag, size = 0x4, scoped, tag = 'scoped memory for tpu_custom_call.1']
    #allocation13 [shape = 'u8[512]{0}', space=vmem, size = 0x400, scoped, tag = 'input window, operand 6, single buffered']
    #allocation14 [shape = 'u8[32768]{0}', space=vmem, size = 0x8000, scoped, tag = 'input window, operand 7, single buffered']
    #allocation15 [shape = 's32[1]{0}', space=sflag, size = 0x4, scoped, tag = 'scoped memory for tpu_custom_call.1']
    #allocation16 [shape = 'u8[512]{0}', space=vmem, size = 0x400, scoped, tag = 'input window, operand 8, single buffered']
    #allocation17 [shape = 'u8[512]{0}', space=vmem, size = 0x400, scoped, tag = 'input window, operand 9, single buffered']
    #allocation18 [shape = 's32[1]{0}', space=sflag, size = 0x4, scoped, tag = 'scoped memory for tpu_custom_call.1']
    #allocation19 [shape = 'u8[512]{0}', space=vmem, size = 0x400, scoped, tag = 'input window, operand 10, single buffered']
    #allocation20 [shape = 'u8[512]{0}', space=vmem, size = 0x400, scoped, tag = 'input window, operand 11, single buffered']
    #allocation21 [shape = 's32[1]{0}', space=sflag, size = 0x4, scoped, tag = 'scoped memory for tpu_custom_call.1']
    #allocation22 [shape = 'u8[512]{0}', space=vmem, size = 0x400, scoped, tag = 'input window, operand 12, single buffered']
    #allocation23 [shape = 'u8[8192]{0}', space=vmem, size = 0x2000, scoped, tag = 'output window, operand 0, single buffered']
    #allocation24 [shape = 'u8[8192]{0}', space=vmem, size = 0x2000, scoped, tag = 'output window, operand 1, single buffered']
    #allocation25 [shape = 's32[1]{0}', space=sflag, size = 0x4, scoped, tag = 'scoped memory for tpu_custom_call.1']
    %20 = vsyncpa [#allocation3], 0
    %21 = vsyncpa [#allocation6], 0
    %22 = vsyncpa [#allocation9], 0
    %23 = vsyncpa [#allocation12], 0
    %24 = vsyncpa [#allocation15], 0
    %25 = vsyncpa [#allocation18], 0
    %26 = vsyncpa [#allocation21], 0
    %27 = vsyncpa [#allocation4], 0
    %28 = vsyncpa [#allocation25], 0
    // Predicated region
    $region2: #{tpu_custom_call.1} parent=1 // pred_check
      _
    $region3: #{tpu_custom_call.1} parent=1 // pred_check_branch
      %30 = sbr.rel (0) target = $region5
    $region4: #{tpu_custom_call.1} parent=1 // pred_region
      %s32 = ssub.s32 256, 256
      %33 = vsyncadd [#allocation3], %s32
      %s34 = sshll.u32 [#allocation2], 4
      %s35 = int_to_ptr.vmem [resolvable:$true] %s34
      %40 = dma.hbm_to_vmem [thread:$0]  %s0, 256, %s35, [#allocation3], 128, 128, 8
    $region5: #{tpu_custom_call.1} parent=1 // pred_fallthru
      _
    // Predicated region
    $region6: #{tpu_custom_call.1} parent=1 // pred_check
      _
    $region7: #{tpu_custom_call.1} parent=1 // pred_check_branch
      %42 = sbr.rel (0) target = $region9
    $region8: #{tpu_custom_call.1} parent=1 // pred_region
      %s44 = ssub.s32 512, 512
      %45 = vsyncadd [#allocation6], %s44
      %s46 = sshll.u32 [#allocation5], 4
      %s47 = int_to_ptr.vmem [resolvable:$true] %s46
      %52 = dma.hbm_to_vmem [thread:$0]  %s1, 512, %s47, [#allocation6], 128, 128, 8
    $region9: #{tpu_custom_call.1} parent=1 // pred_fallthru
      _
    // Predicated region
    $region10: #{tpu_custom_call.1} parent=1 // pred_check
      _
    $region11: #{tpu_custom_call.1} parent=1 // pred_check_branch
      %54 = sbr.rel (0) target = $region13
    $region12: #{tpu_custom_call.1} parent=1 // pred_region
      %s56 = ssub.s32 16, 16
      %57 = vsyncadd [#allocation6], %s56
      %s59 = sshll.u32 [#allocation7], 4
      %s60 = int_to_ptr.vmem [resolvable:$true] %s59
      %62 = dma.hbm_to_vmem [thread:$0]  %s2, 16, %s60, [#allocation6]
    $region13: #{tpu_custom_call.1} parent=1 // pred_fallthru
      _
    // Predicated region
    $region14: #{tpu_custom_call.1} parent=1 // pred_check
      _
    $region15: #{tpu_custom_call.1} parent=1 // pred_check_branch
      %64 = sbr.rel (0) target = $region17
    $region16: #{tpu_custom_call.1} parent=1 // pred_region
      %s66 = ssub.s32 512, 512
      %67 = vsyncadd [#allocation9], %s66
      %s68 = sshll.u32 [#allocation8], 4
      %s69 = int_to_ptr.vmem [resolvable:$true] %s68
      %74 = dma.hbm_to_vmem [thread:$0]  %s3, 512, %s69, [#allocation9], 128, 128, 8
    $region17: #{tpu_custom_call.1} parent=1 // pred_fallthru
      _
    // Predicated region
    $region18: #{tpu_custom_call.1} parent=1 // pred_check
      _
    $region19: #{tpu_custom_call.1} parent=1 // pred_check_branch
      %76 = sbr.rel (0) target = $region21
    $region20: #{tpu_custom_call.1} parent=1 // pred_region
      %s78 = ssub.s32 16, 16
      %79 = vsyncadd [#allocation9], %s78
      %s81 = sshll.u32 [#allocation10], 4
      %s82 = int_to_ptr.vmem [resolvable:$true] %s81
      %84 = dma.hbm_to_vmem [thread:$0]  %s4, 16, %s82, [#allocation9]
    $region21: #{tpu_custom_call.1} parent=1 // pred_fallthru
      _
    // Predicated region
    $region22: #{tpu_custom_call.1} parent=1 // pred_check
      _
    $region23: #{tpu_custom_call.1} parent=1 // pred_check_branch
      %86 = sbr.rel (0) target = $region25
    $region24: #{tpu_custom_call.1} parent=1 // pred_region
      %s88 = ssub.s32 512, 512
      %89 = vsyncadd [#allocation12], %s88
      %s90 = sshll.u32 [#allocation11], 4
      %s91 = int_to_ptr.vmem [resolvable:$true] %s90
      %96 = dma.hbm_to_vmem [thread:$0]  %s5, 512, %s91, [#allocation12], 128, 128, 8
    $region25: #{tpu_custom_call.1} parent=1 // pred_fallthru
      _
    // Predicated region
    $region26: #{tpu_custom_call.1} parent=1 // pred_check
      _
    $region27: #{tpu_custom_call.1} parent=1 // pred_check_branch
      %98 = sbr.rel (0) target = $region29
    $region28: #{tpu_custom_call.1} parent=1 // pred_region
      %s100 = ssub.s32 16, 16
      %101 = vsyncadd [#allocation12], %s100
      %s103 = sshll.u32 [#allocation13], 4
      %s104 = int_to_ptr.vmem [resolvable:$true] %s103
      %106 = dma.hbm_to_vmem [thread:$0]  %s6, 16, %s104, [#allocation12]
    $region29: #{tpu_custom_call.1} parent=1 // pred_fallthru
      _
    // Predicated region
    $region30: #{tpu_custom_call.1} parent=1 // pred_check
      _
    $region31: #{tpu_custom_call.1} parent=1 // pred_check_branch
      %108 = sbr.rel (0) target = $region33
    $region32: #{tpu_custom_call.1} parent=1 // pred_region
      %s110 = ssub.s32 1024, 1024
      %111 = vsyncadd [#allocation15], %s110
      %s112 = sshll.u32 [#allocation14], 4
      %s113 = int_to_ptr.vmem [resolvable:$true] %s112
      %118 = dma.hbm_to_vmem [thread:$0]  %s7, 1024, %s113, [#allocation15], 128, 128, 8
    $region33: #{tpu_custom_call.1} parent=1 // pred_fallthru
      _
    // Predicated region
    $region34: #{tpu_custom_call.1} parent=1 // pred_check
      _
    $region35: #{tpu_custom_call.1} parent=1 // pred_check_branch
      %120 = sbr.rel (0) target = $region37
    $region36: #{tpu_custom_call.1} parent=1 // pred_region
      %s122 = ssub.s32 16, 16
      %123 = vsyncadd [#allocation15], %s122
      %s125 = sshll.u32 [#allocation16], 4
      %s126 = int_to_ptr.vmem [resolvable:$true] %s125
      %128 = dma.hbm_to_vmem [thread:$0]  %s8, 16, %s126, [#allocation15]
    $region37: #{tpu_custom_call.1} parent=1 // pred_fallthru
      _
    // Predicated region
    $region38: #{tpu_custom_call.1} parent=1 // pred_check
      _
    $region39: #{tpu_custom_call.1} parent=1 // pred_check_branch
      %130 = sbr.rel (0) target = $region41
    $region40: #{tpu_custom_call.1} parent=1 // pred_region
      %s132 = ssub.s32 16, 16
      %133 = vsyncadd [#allocation18], %s132
      %s135 = sshll.u32 [#allocation17], 4
      %s136 = int_to_ptr.vmem [resolvable:$true] %s135
      %138 = dma.hbm_to_vmem [thread:$0]  %s9, 16, %s136, [#allocation18]
    $region41: #{tpu_custom_call.1} parent=1 // pred_fallthru
      _
    // Predicated region
    $region42: #{tpu_custom_call.1} parent=1 // pred_check
      _
    $region43: #{tpu_custom_call.1} parent=1 // pred_check_branch
      %140 = sbr.rel (0) target = $region45
    $region44: #{tpu_custom_call.1} parent=1 // pred_region
      %s142 = ssub.s32 16, 16
      %143 = vsyncadd [#allocation18], %s142
      %s145 = sshll.u32 [#allocation19], 4
      %s146 = int_to_ptr.vmem [resolvable:$true] %s145
      %148 = dma.hbm_to_vmem [thread:$0]  %s10, 16, %s146, [#allocation18]
    $region45: #{tpu_custom_call.1} parent=1 // pred_fallthru
      _
    // Predicated region
    $region46: #{tpu_custom_call.1} parent=1 // pred_check
      _
    $region47: #{tpu_custom_call.1} parent=1 // pred_check_branch
      %150 = sbr.rel (0) target = $region49
    $region48: #{tpu_custom_call.1} parent=1 // pred_region
      %s152 = ssub.s32 16, 16
      %153 = vsyncadd [#allocation21], %s152
      %s155 = sshll.u32 [#allocation20], 4
      %s156 = int_to_ptr.vmem [resolvable:$true] %s155
      %158 = dma.hbm_to_vmem [thread:$0]  %s11, 16, %s156, [#allocation21]
    $region49: #{tpu_custom_call.1} parent=1 // pred_fallthru
      _
    // Predicated region
    $region50: #{tpu_custom_call.1} parent=1 // pred_check
      _
    $region51: #{tpu_custom_call.1} parent=1 // pred_check_branch
      %160 = sbr.rel (0) target = $region53
    $region52: #{tpu_custom_call.1} parent=1 // pred_region
      %s162 = ssub.s32 16, 16
      %163 = vsyncadd [#allocation21], %s162
      %s165 = sshll.u32 [#allocation22], 4
      %s166 = int_to_ptr.vmem [resolvable:$true] %s165
      %168 = dma.hbm_to_vmem [thread:$0]  %s12, 16, %s166, [#allocation21]
    $region53: #{tpu_custom_call.1} parent=1 // pred_fallthru
      _
    // Predicated region
    $region54: #{tpu_custom_call.1} parent=1 // pred_check
      _
    $region55: #{tpu_custom_call.1} parent=1 // pred_check_branch
      %170 = sbr.rel (0) target = $region57
    $region56: #{tpu_custom_call.1} parent=1 // pred_region
      %171 = dma.done [#allocation3], 256
    $region57: #{tpu_custom_call.1} parent=1 // pred_fallthru
      _
    // Predicated region
    $region58: #{tpu_custom_call.1} parent=1 // pred_check
      _
    $region59: #{tpu_custom_call.1} parent=1 // pred_check_branch
      %173 = sbr.rel (0) target = $region61
    $region60: #{tpu_custom_call.1} parent=1 // pred_region
      %174 = dma.done [#allocation6], 512
    $region61: #{tpu_custom_call.1} parent=1 // pred_fallthru
      _
    // Predicated region
    $region62: #{tpu_custom_call.1} parent=1 // pred_check
      _
    $region63: #{tpu_custom_call.1} parent=1 // pred_check_branch
      %176 = sbr.rel (0) target = $region65
    $region64: #{tpu_custom_call.1} parent=1 // pred_region
      %177 = dma.done [#allocation6], 16
    $region65: #{tpu_custom_call.1} parent=1 // pred_fallthru
      _
    // Predicated region
    $region66: #{tpu_custom_call.1} parent=1 // pred_check
      _
    $region67: #{tpu_custom_call.1} parent=1 // pred_check_branch
      %179 = sbr.rel (0) target = $region69
    $region68: #{tpu_custom_call.1} parent=1 // pred_region
      %180 = dma.done [#allocation9], 512
    $region69: #{tpu_custom_call.1} parent=1 // pred_fallthru
      _
    // Predicated region
    $region70: #{tpu_custom_call.1} parent=1 // pred_check
      _
    $region71: #{tpu_custom_call.1} parent=1 // pred_check_branch
      %182 = sbr.rel (0) target = $region73
    $region72: #{tpu_custom_call.1} parent=1 // pred_region
      %183 = dma.done [#allocation9], 16
    $region73: #{tpu_custom_call.1} parent=1 // pred_fallthru
      _
    // Predicated region
    $region74: #{tpu_custom_call.1} parent=1 // pred_check
      _
    $region75: #{tpu_custom_call.1} parent=1 // pred_check_branch
      %185 = sbr.rel (0) target = $region77
    $region76: #{tpu_custom_call.1} parent=1 // pred_region
      %186 = dma.done [#allocation12], 512
    $region77: #{tpu_custom_call.1} parent=1 // pred_fallthru
      _
    // Predicated region
    $region78: #{tpu_custom_call.1} parent=1 // pred_check
      _
    $region79: #{tpu_custom_call.1} parent=1 // pred_check_branch
      %188 = sbr.rel (0) target = $region81
    $region80: #{tpu_custom_call.1} parent=1 // pred_region
      %189 = dma.done [#allocation12], 16
    $region81: #{tpu_custom_call.1} parent=1 // pred_fallthru
      _
    // Predicated region
    $region82: #{tpu_custom_call.1} parent=1 // pred_check
      _
    $region83: #{tpu_custom_call.1} parent=1 // pred_check_branch
      %191 = sbr.rel (0) target = $region85
    $region84: #{tpu_custom_call.1} parent=1 // pred_region
      %192 = dma.done [#allocation15], 1024
    $region85: #{tpu_custom_call.1} parent=1 // pred_fallthru
      _
    // Predicated region
    $region86: #{tpu_custom_call.1} parent=1 // pred_check
      _
    $region87: #{tpu_custom_call.1} parent=1 // pred_check_branch
      %194 = sbr.rel (0) target = $region89
    $region88: #{tpu_custom_call.1} parent=1 // pred_region
      %195 = dma.done [#allocation15], 16
    $region89: #{tpu_custom_call.1} parent=1 // pred_fallthru
      _
    // Predicated region
    $region90: #{tpu_custom_call.1} parent=1 // pred_check
      _
    $region91: #{tpu_custom_call.1} parent=1 // pred_check_branch
      %197 = sbr.rel (0) target = $region93
    $region92: #{tpu_custom_call.1} parent=1 // pred_region
      %198 = dma.done [#allocation18], 16
    $region93: #{tpu_custom_call.1} parent=1 // pred_fallthru
      _
    // Predicated region
    $region94: #{tpu_custom_call.1} parent=1 // pred_check
      _
    $region95: #{tpu_custom_call.1} parent=1 // pred_check_branch
      %200 = sbr.rel (0) target = $region97
    $region96: #{tpu_custom_call.1} parent=1 // pred_region
      %201 = dma.done [#allocation18], 16
    $region97: #{tpu_custom_call.1} parent=1 // pred_fallthru
      _
    // Predicated region
    $region98: #{tpu_custom_call.1} parent=1 // pred_check
      _
    $region99: #{tpu_custom_call.1} parent=1 // pred_check_branch
      %203 = sbr.rel (0) target = $region101
    $region100: #{tpu_custom_call.1} parent=1 // pred_region
      %204 = dma.done [#allocation21], 16
    $region101: #{tpu_custom_call.1} parent=1 // pred_fallthru
      _
    // Predicated region
    $region102: #{tpu_custom_call.1} parent=1 // pred_check
      _
    $region103: #{tpu_custom_call.1} parent=1 // pred_check_branch
      %206 = sbr.rel (0) target = $region105
    $region104: #{tpu_custom_call.1} parent=1 // pred_region
      %207 = dma.done [#allocation21], 16
    $region105: #{tpu_custom_call.1} parent=1 // pred_fallthru
      _
    %v208 = vld [vmem:[#allocation2] sm:$0xff]
    %v209 = vld [vmem:[#allocation2 + $0x8] sm:$0xff]
    %v210 = vld [vmem:[#allocation5] sm:$0xff]
    %v211 = vld [vmem:[#allocation5 + $0x8] sm:$0xff]
    %v212 = vld [vmem:[#allocation5 + $0x10] sm:$0xff]
    %v213 = vld [vmem:[#allocation5 + $0x18] sm:$0xff]
    %v214 = vld [vmem:[#allocation7] sm:$0x1]
    %v216 = vlaneseq
    %v217 = vshrl.u32 %v216, 7
    %v218 = vsub.s32 0, %v217
    %v219 = vrot.slane %v214, %v218
    %vm221 = vcmask 261120
    %v223 = vsel %vm221, %v208, 0
    %v226 = vsel %vm221, %v209, 0
    %228 = vmatprep.subr.mxu0 0.0
    %229 = vmatpush1.msra.mxu0 %v210
    %230 = vmatprep.subr.mxu0 0.0
    %231 = vmatpush1.msra.mxu0 %v211
    %232 = vmatprep.subr.mxu0 0.0
    %233 = vmatpush1.msra.mxu0 %v212
    %234 = vmatprep.subr.mxu0 0.0
    %235 = vmatpush1.msra.mxu0 %v213
    %236 = vmatprep.subr.mxu0 0.0
    %237 = vmatpush1.msra.mxu0 0.0
    %238 = vmatprep.subr.mxu0 0.0
    %239 = vmatpush1.msra.mxu0 0.0
    %240 = vmatprep.subr.mxu0 0.0
    %241 = vmatpush1.msra.mxu0 0.0
    %242 = vmatprep.subr.mxu0 0.0
    %243 = vmatpush1.msra.mxu0 0.0
    %244 = vmatprep.subr.mxu0 0.0
    %245 = vmatpush1.msra.mxu0 0.0
    %246 = vmatprep.subr.mxu0 0.0
    %247 = vmatpush1.msra.mxu0 0.0
    %248 = vmatprep.subr.mxu0 0.0
    %249 = vmatpush1.msra.mxu0 0.0
    %250 = vmatprep.subr.mxu0 0.0
    %251 = vmatpush1.msra.mxu0 0.0
    %252 = vmatprep.subr.mxu0 0.0
    %253 = vmatpush1.msra.mxu0 0.0
    %254 = vmatprep.subr.mxu0 0.0
    %255 = vmatpush1.msra.mxu0 0.0
    %256 = vmatprep.subr.mxu0 0.0
    %257 = vmatpush1.msra.mxu0 0.0
    %258 = vmatprep.subr.mxu0 0.0
    %259 = vmatpush1.msra.mxu0 0.0
    %260 = vmatprep.subr.mxu0 0.0
    %261 = vmatpush1.msra.mxu0 0.0
    %262 = vmatprep.subr.mxu0 0.0
    %263 = vmatpush1.msra.mxu0 0.0
    %264 = vmatprep.subr.mxu0 0.0
    %265 = vmatpush1.msra.mxu0 0.0
    %266 = vmatprep.subr.mxu0 0.0
    %267 = vmatpush1.msra.mxu0 0.0
    %268 = vmatprep.subr.mxu0 0.0
    %269 = vmatpush1.msra.mxu0 0.0
    %270 = vmatprep.subr.mxu0 0.0
    %271 = vmatpush1.msra.mxu0 0.0
    %272 = vmatprep.subr.mxu0 0.0
    %273 = vmatpush1.msra.mxu0 0.0
    %274 = vmatprep.subr.mxu0 0.0
    %275 = vmatpush1.msra.mxu0 0.0
    %276 = vmatprep.subr.mxu0 0.0
    %277 = vmatpush1.msra.mxu0 0.0
    %278 = vmatprep.subr.mxu0 0.0
    %279 = vmatpush1.msra.mxu0 0.0
    %280 = vmatprep.subr.mxu0 0.0
    %281 = vmatpush1.msra.mxu0 0.0
    %282 = vmatprep.subr.mxu0 0.0
    %283 = vmatpush1.msra.mxu0 0.0
    %284 = vmatprep.subr.mxu0 0.0
    %285 = vmatpush1.msra.mxu0 0.0
    %286 = vmatprep.subr.mxu0 0.0
    %287 = vmatpush1.msra.mxu0 0.0
    %288 = vmatprep.subr.mxu0 0.0
    %289 = vmatpush1.msra.mxu0 0.0
    %290 = vmatprep.subr.mxu0 0.0
    %291 = vmatpush1.msra.mxu0 0.0
    %292 = vmatprep.mubr.f32.mxu0 0.0
    %293 = vmatmul.mubr.f32.gmra.mrb[0].mxu0 %v223
    %v294 = vpop.f32.mrb[0].mxu0
    %v295 = vadd.f32 %v219, %v294
    %v296 = vpop.f32.mrb[0].mxu0
    %297 = vmatprep.mubr.f32.mxu0 0.0
    %298 = vmatmul.mubr.f32.gmra.mrb[0].mxu0 %v226
    %v299 = vpop.f32.mrb[0].mxu0
    %v300 = vadd.f32 %v219, %v299
    %v301 = vpop.f32.mrb[0].mxu0
    %302 = vdwg.mxu0
    %304 = vrot.lane.b32.xlu0 %v295, 96
    %v305 = vpop.permute.xlu0 %304
    %vm306 = vcmask 64512
    %v307 = vsel %vm306, %v295, 0
    %v309 = vsel %vm306, %v305, 0
    %311 = vmatprep.subr.mxu0 0.0
    %312 = vmatpush1.xpose.msra.mxu0 %v309
    %313 = vmatprep.subr.mxu0 0.0
    %314 = vmatpush1.xpose.msra.mxu0 0.0
    %315 = vmatprep.subr.mxu0 0.0
    %316 = vmatpush1.xpose.msra.mxu0 0.0
    %317 = vmatprep.subr.mxu0 0.0
    %318 = vmatpush1.xpose.msra.mxu0 0.0
    %319 = vmatprep.subr.mxu0 0.0
    %320 = vmatpush1.xpose.msra.mxu0 0.0
    %321 = vmatprep.subr.mxu0 0.0
    %322 = vmatpush1.xpose.msra.mxu0 0.0
    %323 = vmatprep.subr.mxu0 0.0
    %324 = vmatpush1.xpose.msra.mxu0 0.0
    %325 = vmatprep.subr.mxu0 0.0
    %326 = vmatpush1.xpose.msra.mxu0 0.0
    %327 = vmatprep.subr.mxu0 0.0
    %328 = vmatpush1.xpose.msra.mxu0 0.0
    %329 = vmatprep.subr.mxu0 0.0
    %330 = vmatpush1.xpose.msra.mxu0 0.0
    %331 = vmatprep.subr.mxu0 0.0
    %332 = vmatpush1.xpose.msra.mxu0 0.0
    %333 = vmatprep.subr.mxu0 0.0
    %334 = vmatpush1.xpose.msra.mxu0 0.0
    %335 = vmatprep.subr.mxu0 0.0
    %336 = vmatpush1.xpose.msra.mxu0 0.0
    %337 = vmatprep.subr.mxu0 0.0
    %338 = vmatpush1.xpose.msra.mxu0 0.0
    %339 = vmatprep.subr.mxu0 0.0
    %340 = vmatpush1.xpose.msra.mxu0 0.0
    %341 = vmatprep.subr.mxu0 0.0
    %342 = vmatpush1.xpose.msra.mxu0 0.0
    %343 = vmatprep.subr.mxu0 0.0
    %344 = vmatpush1.xpose.msra.mxu0 0.0
    %345 = vmatprep.subr.mxu0 0.0
    %346 = vmatpush1.xpose.msra.mxu0 0.0
    %347 = vmatprep.subr.mxu0 0.0
    %348 = vmatpush1.xpose.msra.mxu0 0.0
    %349 = vmatprep.subr.mxu0 0.0
    %350 = vmatpush1.xpose.msra.mxu0 0.0
    %351 = vmatprep.subr.mxu0 0.0
    %352 = vmatpush1.xpose.msra.mxu0 0.0
    %353 = vmatprep.subr.mxu0 0.0
    %354 = vmatpush1.xpose.msra.mxu0 0.0
    %355 = vmatprep.subr.mxu0 0.0
    %356 = vmatpush1.xpose.msra.mxu0 0.0
    %357 = vmatprep.subr.mxu0 0.0
    %358 = vmatpush1.xpose.msra.mxu0 0.0
    %359 = vmatprep.subr.mxu0 0.0
    %360 = vmatpush1.xpose.msra.mxu0 0.0
    %361 = vmatprep.subr.mxu0 0.0
    %362 = vmatpush1.xpose.msra.mxu0 0.0
    %363 = vmatprep.subr.mxu0 0.0
    %364 = vmatpush1.xpose.msra.mxu0 0.0
    %365 = vmatprep.subr.mxu0 0.0
    %366 = vmatpush1.xpose.msra.mxu0 0.0
    %367 = vmatprep.subr.mxu0 0.0
    %368 = vmatpush1.xpose.msra.mxu0 0.0
    %369 = vmatprep.subr.mxu0 0.0
    %370 = vmatpush1.xpose.msra.mxu0 0.0
    %371 = vmatprep.subr.mxu0 0.0
    %372 = vmatpush1.xpose.msra.mxu0 0.0
    %373 = vmatprep.subr.mxu0 0.0
    %374 = vmatpush1.xpose.msra.mxu0 0.0
    %375 = vmatprep.mubr.f32.mxu0 0.0
    %376 = vmatmul.mubr.f32.gmra.mrb[0].mxu0 %v307
    %v377 = vpop.f32.mrb[0].mxu0
    %v378 = vadd.f32 0.0, %v377
    %v379 = vpop.f32.mrb[0].mxu0
    %380 = vdwg.mxu0
    %382 = vrot.lane.b32.xlu0 %v300, 96
    %v383 = vpop.permute.xlu0 %382
    %v384 = vsel %vm306, %v300, 0
    %v386 = vsel %vm306, %v383, 0
    %388 = vmatprep.subr.mxu0 0.0
    %389 = vmatpush1.xpose.msra.mxu0 %v386
    %390 = vmatprep.subr.mxu0 0.0
    %391 = vmatpush1.xpose.msra.mxu0 0.0
    %392 = vmatprep.subr.mxu0 0.0
    %393 = vmatpush1.xpose.msra.mxu0 0.0
    %394 = vmatprep.subr.mxu0 0.0
    %395 = vmatpush1.xpose.msra.mxu0 0.0
    %396 = vmatprep.subr.mxu0 0.0
    %397 = vmatpush1.xpose.msra.mxu0 0.0
    %398 = vmatprep.subr.mxu0 0.0
    %399 = vmatpush1.xpose.msra.mxu0 0.0
    %400 = vmatprep.subr.mxu0 0.0
    %401 = vmatpush1.xpose.msra.mxu0 0.0
    %402 = vmatprep.subr.mxu0 0.0
    %403 = vmatpush1.xpose.msra.mxu0 0.0
    %404 = vmatprep.subr.mxu0 0.0
    %405 = vmatpush1.xpose.msra.mxu0 0.0
    %406 = vmatprep.subr.mxu0 0.0
    %407 = vmatpush1.xpose.msra.mxu0 0.0
    %408 = vmatprep.subr.mxu0 0.0
    %409 = vmatpush1.xpose.msra.mxu0 0.0
    %410 = vmatprep.subr.mxu0 0.0
    %411 = vmatpush1.xpose.msra.mxu0 0.0
    %412 = vmatprep.subr.mxu0 0.0
    %413 = vmatpush1.xpose.msra.mxu0 0.0
    %414 = vmatprep.subr.mxu0 0.0
    %415 = vmatpush1.xpose.msra.mxu0 0.0
    %416 = vmatprep.subr.mxu0 0.0
    %417 = vmatpush1.xpose.msra.mxu0 0.0
    %418 = vmatprep.subr.mxu0 0.0
    %419 = vmatpush1.xpose.msra.mxu0 0.0
    %420 = vmatprep.subr.mxu0 0.0
    %421 = vmatpush1.xpose.msra.mxu0 0.0
    %422 = vmatprep.subr.mxu0 0.0
    %423 = vmatpush1.xpose.msra.mxu0 0.0
    %424 = vmatprep.subr.mxu0 0.0
    %425 = vmatpush1.xpose.msra.mxu0 0.0
    %426 = vmatprep.subr.mxu0 0.0
    %427 = vmatpush1.xpose.msra.mxu0 0.0
    %428 = vmatprep.subr.mxu0 0.0
    %429 = vmatpush1.xpose.msra.mxu0 0.0
    %430 = vmatprep.subr.mxu0 0.0
    %431 = vmatpush1.xpose.msra.mxu0 0.0
    %432 = vmatprep.subr.mxu0 0.0
    %433 = vmatpush1.xpose.msra.mxu0 0.0
    %434 = vmatprep.subr.mxu0 0.0
    %435 = vmatpush1.xpose.msra.mxu0 0.0
    %436 = vmatprep.subr.mxu0 0.0
    %437 = vmatpush1.xpose.msra.mxu0 0.0
    %438 = vmatprep.subr.mxu0 0.0
    %439 = vmatpush1.xpose.msra.mxu0 0.0
    %440 = vmatprep.subr.mxu0 0.0
    %441 = vmatpush1.xpose.msra.mxu0 0.0
    %442 = vmatprep.subr.mxu0 0.0
    %443 = vmatpush1.xpose.msra.mxu0 0.0
    %444 = vmatprep.subr.mxu0 0.0
    %445 = vmatpush1.xpose.msra.mxu0 0.0
    %446 = vmatprep.subr.mxu0 0.0
    %447 = vmatpush1.xpose.msra.mxu0 0.0
    %448 = vmatprep.subr.mxu0 0.0
    %449 = vmatpush1.xpose.msra.mxu0 0.0
    %450 = vmatprep.subr.mxu0 0.0
    %451 = vmatpush1.xpose.msra.mxu0 0.0
    %452 = vmatprep.mubr.f32.mxu0 0.0
    %453 = vmatmul.mubr.f32.gmra.mrb[0].mxu0 %v384
    %v454 = vpop.f32.mrb[0].mxu0
    %v455 = vadd.f32 0.0, %v454
    %v456 = vpop.f32.mrb[0].mxu0
    %457 = vdwg.mxu0
    %v458 = vmul.f32 %v378, 0.35355338
    %v459 = vmul.f32 %v455, 0.35355338
    %v460 = vsel %vm306, %v458, -inf
    %461 = vmax.xlane.f32.xlu0 %v460
    %v462 = vpop.xlane.xlu0 %461
    %v463 = vsel %vm306, %v459, -inf
    %464 = vmax.xlane.f32.xlu0 %v463
    %v465 = vpop.xlane.xlu0 %464
    %v466 = vsub.f32 %v458, %v462
    %v467 = vsub.f32 %v459, %v465
    %v468 = vmul.f32 %v466, 1.442695
    %v469 = vpow.pop %v468
    %v470 = vmul.f32 %v467, 1.442695
    %v471 = vpow.pop %v470
    %v472 = vsel %vm306, %v469, 0.0
    %473 = vadd.xlane.f32.xlu0 %v472
    %v474 = vpop.xlane.xlu0 %473
    %v475 = vsel %vm306, %v471, 0.0
    %476 = vadd.xlane.f32.xlu0 %v475
    %v477 = vpop.xlane.xlu0 %476
    %v478 = vrcp.pop %v474
    %v479 = vrcp.pop %v477
    %v480 = vmul.f32 %v474, %v478
    %v481 = vmul.f32 %v477, %v479
    %v482 = vsub.f32 2.0, %v480
    %v483 = vsub.f32 2.0, %v481
    %v484 = vmul.f32 %v478, %v482
    %v485 = vmul.f32 %v479, %v483
    %v486 = vmul.f32 %v469, %v484
    %v487 = vmul.f32 %v471, %v485
    %488 = vrot.lane.b32.xlu0 %v295, 64
    %v489 = vpop.permute.xlu0 %488
    %v492 = vsel %vm306, %v486, 0
    %494 = vmatprep.subr.mxu0 0.0
    %495 = vmatpush1.msra.mxu0 %v489
    %496 = vmatprep.subr.mxu0 0.0
    %497 = vmatpush1.msra.mxu0 0.0
    %498 = vmatprep.subr.mxu0 0.0
    %499 = vmatpush1.msra.mxu0 0.0
    %500 = vmatprep.subr.mxu0 0.0
    %501 = vmatpush1.msra.mxu0 0.0
    %502 = vmatprep.subr.mxu0 0.0
    %503 = vmatpush1.msra.mxu0 0.0
    %504 = vmatprep.subr.mxu0 0.0
    %505 = vmatpush1.msra.mxu0 0.0
    %506 = vmatprep.subr.mxu0 0.0
    %507 = vmatpush1.msra.mxu0 0.0
    %508 = vmatprep.subr.mxu0 0.0
    %509 = vmatpush1.msra.mxu0 0.0
    %510 = vmatprep.subr.mxu0 0.0
    %511 = vmatpush1.msra.mxu0 0.0
    %512 = vmatprep.subr.mxu0 0.0
    %513 = vmatpush1.msra.mxu0 0.0
    %514 = vmatprep.subr.mxu0 0.0
    %515 = vmatpush1.msra.mxu0 0.0
    %516 = vmatprep.subr.mxu0 0.0
    %517 = vmatpush1.msra.mxu0 0.0
    %518 = vmatprep.subr.mxu0 0.0
    %519 = vmatpush1.msra.mxu0 0.0
    %520 = vmatprep.subr.mxu0 0.0
    %521 = vmatpush1.msra.mxu0 0.0
    %522 = vmatprep.subr.mxu0 0.0
    %523 = vmatpush1.msra.mxu0 0.0
    %524 = vmatprep.subr.mxu0 0.0
    %525 = vmatpush1.msra.mxu0 0.0
    %526 = vmatprep.subr.mxu0 0.0
    %527 = vmatpush1.msra.mxu0 0.0
    %528 = vmatprep.subr.mxu0 0.0
    %529 = vmatpush1.msra.mxu0 0.0
    %530 = vmatprep.subr.mxu0 0.0
    %531 = vmatpush1.msra.mxu0 0.0
    %532 = vmatprep.subr.mxu0 0.0
    %533 = vmatpush1.msra.mxu0 0.0
    %534 = vmatprep.subr.mxu0 0.0
    %535 = vmatpush1.msra.mxu0 0.0
    %536 = vmatprep.subr.mxu0 0.0
    %537 = vmatpush1.msra.mxu0 0.0
    %538 = vmatprep.subr.mxu0 0.0
    %539 = vmatpush1.msra.mxu0 0.0
    %540 = vmatprep.subr.mxu0 0.0
    %541 = vmatpush1.msra.mxu0 0.0
    %542 = vmatprep.subr.mxu0 0.0
    %543 = vmatpush1.msra.mxu0 0.0
    %544 = vmatprep.subr.mxu0 0.0
    %545 = vmatpush1.msra.mxu0 0.0
    %546 = vmatprep.subr.mxu0 0.0
    %547 = vmatpush1.msra.mxu0 0.0
    %548 = vmatprep.subr.mxu0 0.0
    %549 = vmatpush1.msra.mxu0 0.0
    %550 = vmatprep.subr.mxu0 0.0
    %551 = vmatpush1.msra.mxu0 0.0
    %552 = vmatprep.subr.mxu0 0.0
    %553 = vmatpush1.msra.mxu0 0.0
    %554 = vmatprep.subr.mxu0 0.0
    %555 = vmatpush1.msra.mxu0 0.0
    %556 = vmatprep.subr.mxu0 0.0
    %557 = vmatpush1.msra.mxu0 0.0
    %558 = vmatprep.mubr.f32.mxu0 0.0
    %559 = vmatmul.mubr.f32.gmra.mrb[0].mxu0 %v492
    %v560 = vpop.f32.mrb[0].mxu0
    %v561 = vadd.f32 0.0, %v560
    %v562 = vpop.f32.mrb[0].mxu0
    %563 = vdwg.mxu0
    %564 = vrot.lane.b32.xlu0 %v300, 64
    %v565 = vpop.permute.xlu0 %564
    %v568 = vsel %vm306, %v487, 0
    %570 = vmatprep.subr.mxu0 0.0
    %571 = vmatpush1.msra.mxu0 %v565
    %572 = vmatprep.subr.mxu0 0.0
    %573 = vmatpush1.msra.mxu0 0.0
    %574 = vmatprep.subr.mxu0 0.0
    %575 = vmatpush1.msra.mxu0 0.0
    %576 = vmatprep.subr.mxu0 0.0
    %577 = vmatpush1.msra.mxu0 0.0
    %578 = vmatprep.subr.mxu0 0.0
    %579 = vmatpush1.msra.mxu0 0.0
    %580 = vmatprep.subr.mxu0 0.0
    %581 = vmatpush1.msra.mxu0 0.0
    %582 = vmatprep.subr.mxu0 0.0
    %583 = vmatpush1.msra.mxu0 0.0
    %584 = vmatprep.subr.mxu0 0.0
    %585 = vmatpush1.msra.mxu0 0.0
    %586 = vmatprep.subr.mxu0 0.0
    %587 = vmatpush1.msra.mxu0 0.0
    %588 = vmatprep.subr.mxu0 0.0
    %589 = vmatpush1.msra.mxu0 0.0
    %590 = vmatprep.subr.mxu0 0.0
    %591 = vmatpush1.msra.mxu0 0.0
    %592 = vmatprep.subr.mxu0 0.0
    %593 = vmatpush1.msra.mxu0 0.0
    %594 = vmatprep.subr.mxu0 0.0
    %595 = vmatpush1.msra.mxu0 0.0
    %596 = vmatprep.subr.mxu0 0.0
    %597 = vmatpush1.msra.mxu0 0.0
    %598 = vmatprep.subr.mxu0 0.0
    %599 = vmatpush1.msra.mxu0 0.0
    %600 = vmatprep.subr.mxu0 0.0
    %601 = vmatpush1.msra.mxu0 0.0
    %602 = vmatprep.subr.mxu0 0.0
    %603 = vmatpush1.msra.mxu0 0.0
    %604 = vmatprep.subr.mxu0 0.0
    %605 = vmatpush1.msra.mxu0 0.0
    %606 = vmatprep.subr.mxu0 0.0
    %607 = vmatpush1.msra.mxu0 0.0
    %608 = vmatprep.subr.mxu0 0.0
    %609 = vmatpush1.msra.mxu0 0.0
    %610 = vmatprep.subr.mxu0 0.0
    %611 = vmatpush1.msra.mxu0 0.0
    %612 = vmatprep.subr.mxu0 0.0
    %613 = vmatpush1.msra.mxu0 0.0
    %614 = vmatprep.subr.mxu0 0.0
    %615 = vmatpush1.msra.mxu0 0.0
    %616 = vmatprep.subr.mxu0 0.0
    %617 = vmatpush1.msra.mxu0 0.0
    %618 = vmatprep.subr.mxu0 0.0
    %619 = vmatpush1.msra.mxu0 0.0
    %620 = vmatprep.subr.mxu0 0.0
    %621 = vmatpush1.msra.mxu0 0.0
    %622 = vmatprep.subr.mxu0 0.0
    %623 = vmatpush1.msra.mxu0 0.0
    %624 = vmatprep.subr.mxu0 0.0
    %625 = vmatpush1.msra.mxu0 0.0
    %626 = vmatprep.subr.mxu0 0.0
    %627 = vmatpush1.msra.mxu0 0.0
    %628 = vmatprep.subr.mxu0 0.0
    %629 = vmatpush1.msra.mxu0 0.0
    %630 = vmatprep.subr.mxu0 0.0
    %631 = vmatpush1.msra.mxu0 0.0
    %632 = vmatprep.subr.mxu0 0.0
    %633 = vmatpush1.msra.mxu0 0.0
    %634 = vmatprep.mubr.f32.mxu0 0.0
    %635 = vmatmul.mubr.f32.gmra.mrb[0].mxu0 %v568
    %v636 = vpop.f32.mrb[0].mxu0
    %v637 = vadd.f32 0.0, %v636
    %v638 = vpop.f32.mrb[0].mxu0
    %639 = vdwg.mxu0
    %v640 = vld [vmem:[#allocation8] sm:$0xff]
    %641 = vrot.lane.b32.xlu0 %v295, 120
    %v642 = vpop.permute.xlu0 %641
    %643 = vrot.lane.b32.xlu0 %v295, 88
    %v644 = vpop.permute.xlu0 %643
    %v645 = vsel %vm306, %v642, 0
    %v647 = vsel %vm306, %v644, 0
    %649 = vmatprep.subr.mxu0 0.0
    %650 = vmatpush1.xpose.msra.mxu0 %v647
    %651 = vmatprep.subr.mxu0 0.0
    %652 = vmatpush1.xpose.msra.mxu0 0.0
    %653 = vmatprep.subr.mxu0 0.0
    %654 = vmatpush1.xpose.msra.mxu0 0.0
    %655 = vmatprep.subr.mxu0 0.0
    %656 = vmatpush1.xpose.msra.mxu0 0.0
    %657 = vmatprep.subr.mxu0 0.0
    %658 = vmatpush1.xpose.msra.mxu0 0.0
    %659 = vmatprep.subr.mxu0 0.0
    %660 = vmatpush1.xpose.msra.mxu0 0.0
    %661 = vmatprep.subr.mxu0 0.0
    %662 = vmatpush1.xpose.msra.mxu0 0.0
    %663 = vmatprep.subr.mxu0 0.0
    %664 = vmatpush1.xpose.msra.mxu0 0.0
    %665 = vmatprep.subr.mxu0 0.0
    %666 = vmatpush1.xpose.msra.mxu0 0.0
    %667 = vmatprep.subr.mxu0 0.0
    %668 = vmatpush1.xpose.msra.mxu0 0.0
    %669 = vmatprep.subr.mxu0 0.0
    %670 = vmatpush1.xpose.msra.mxu0 0.0
    %671 = vmatprep.subr.mxu0 0.0
    %672 = vmatpush1.xpose.msra.mxu0 0.0
    %673 = vmatprep.subr.mxu0 0.0
    %674 = vmatpush1.xpose.msra.mxu0 0.0
    %675 = vmatprep.subr.mxu0 0.0
    %676 = vmatpush1.xpose.msra.mxu0 0.0
    %677 = vmatprep.subr.mxu0 0.0
    %678 = vmatpush1.xpose.msra.mxu0 0.0
    %679 = vmatprep.subr.mxu0 0.0
    %680 = vmatpush1.xpose.msra.mxu0 0.0
    %681 = vmatprep.subr.mxu0 0.0
    %682 = vmatpush1.xpose.msra.mxu0 0.0
    %683 = vmatprep.subr.mxu0 0.0
    %684 = vmatpush1.xpose.msra.mxu0 0.0
    %685 = vmatprep.subr.mxu0 0.0
    %686 = vmatpush1.xpose.msra.mxu0 0.0
    %687 = vmatprep.subr.mxu0 0.0
    %688 = vmatpush1.xpose.msra.mxu0 0.0
    %689 = vmatprep.subr.mxu0 0.0
    %690 = vmatpush1.xpose.msra.mxu0 0.0
    %691 = vmatprep.subr.mxu0 0.0
    %692 = vmatpush1.xpose.msra.mxu0 0.0
    %693 = vmatprep.subr.mxu0 0.0
    %694 = vmatpush1.xpose.msra.mxu0 0.0
    %695 = vmatprep.subr.mxu0 0.0
    %696 = vmatpush1.xpose.msra.mxu0 0.0
    %697 = vmatprep.subr.mxu0 0.0
    %698 = vmatpush1.xpose.msra.mxu0 0.0
    %699 = vmatprep.subr.mxu0 0.0
    %700 = vmatpush1.xpose.msra.mxu0 0.0
    %701 = vmatprep.subr.mxu0 0.0
    %702 = vmatpush1.xpose.msra.mxu0 0.0
    %703 = vmatprep.subr.mxu0 0.0
    %704 = vmatpush1.xpose.msra.mxu0 0.0
    %705 = vmatprep.subr.mxu0 0.0
    %706 = vmatpush1.xpose.msra.mxu0 0.0
    %707 = vmatprep.subr.mxu0 0.0
    %708 = vmatpush1.xpose.msra.mxu0 0.0
    %709 = vmatprep.subr.mxu0 0.0
    %710 = vmatpush1.xpose.msra.mxu0 0.0
    %711 = vmatprep.subr.mxu0 0.0
    %712 = vmatpush1.xpose.msra.mxu0 0.0
    %713 = vmatprep.mubr.f32.mxu0 0.0
    %714 = vmatmul.mubr.f32.gmra.mrb[0].mxu0 %v645
    %v715 = vpop.f32.mrb[0].mxu0
    %v716 = vadd.f32 0.0, %v715
    %v717 = vpop.f32.mrb[0].mxu0
    %718 = vdwg.mxu0
    %719 = vrot.lane.b32.xlu0 %v300, 120
    %v720 = vpop.permute.xlu0 %719
    %721 = vrot.lane.b32.xlu0 %v300, 88
    %v722 = vpop.permute.xlu0 %721
    %v723 = vsel %vm306, %v720, 0
    %v725 = vsel %vm306, %v722, 0
    %727 = vmatprep.subr.mxu0 0.0
    %728 = vmatpush1.xpose.msra.mxu0 %v725
    %729 = vmatprep.subr.mxu0 0.0
    %730 = vmatpush1.xpose.msra.mxu0 0.0
    %731 = vmatprep.subr.mxu0 0.0
    %732 = vmatpush1.xpose.msra.mxu0 0.0
    %733 = vmatprep.subr.mxu0 0.0
    %734 = vmatpush1.xpose.msra.mxu0 0.0
    %735 = vmatprep.subr.mxu0 0.0
    %736 = vmatpush1.xpose.msra.mxu0 0.0
    %737 = vmatprep.subr.mxu0 0.0
    %738 = vmatpush1.xpose.msra.mxu0 0.0
    %739 = vmatprep.subr.mxu0 0.0
    %740 = vmatpush1.xpose.msra.mxu0 0.0
    %741 = vmatprep.subr.mxu0 0.0
    %742 = vmatpush1.xpose.msra.mxu0 0.0
    %743 = vmatprep.subr.mxu0 0.0
    %744 = vmatpush1.xpose.msra.mxu0 0.0
    %745 = vmatprep.subr.mxu0 0.0
    %746 = vmatpush1.xpose.msra.mxu0 0.0
    %747 = vmatprep.subr.mxu0 0.0
    %748 = vmatpush1.xpose.msra.mxu0 0.0
    %749 = vmatprep.subr.mxu0 0.0
    %750 = vmatpush1.xpose.msra.mxu0 0.0
    %751 = vmatprep.subr.mxu0 0.0
    %752 = vmatpush1.xpose.msra.mxu0 0.0
    %753 = vmatprep.subr.mxu0 0.0
    %754 = vmatpush1.xpose.msra.mxu0 0.0
    %755 = vmatprep.subr.mxu0 0.0
    %756 = vmatpush1.xpose.msra.mxu0 0.0
    %757 = vmatprep.subr.mxu0 0.0
    %758 = vmatpush1.xpose.msra.mxu0 0.0
    %759 = vmatprep.subr.mxu0 0.0
    %760 = vmatpush1.xpose.msra.mxu0 0.0
    %761 = vmatprep.subr.mxu0 0.0
    %762 = vmatpush1.xpose.msra.mxu0 0.0
    %763 = vmatprep.subr.mxu0 0.0
    %764 = vmatpush1.xpose.msra.mxu0 0.0
    %765 = vmatprep.subr.mxu0 0.0
    %766 = vmatpush1.xpose.msra.mxu0 0.0
    %767 = vmatprep.subr.mxu0 0.0
    %768 = vmatpush1.xpose.msra.mxu0 0.0
    %769 = vmatprep.subr.mxu0 0.0
    %770 = vmatpush1.xpose.msra.mxu0 0.0
    %771 = vmatprep.subr.mxu0 0.0
    %772 = vmatpush1.xpose.msra.mxu0 0.0
    %773 = vmatprep.subr.mxu0 0.0
    %774 = vmatpush1.xpose.msra.mxu0 0.0
    %775 = vmatprep.subr.mxu0 0.0
    %776 = vmatpush1.xpose.msra.mxu0 0.0
    %777 = vmatprep.subr.mxu0 0.0
    %778 = vmatpush1.xpose.msra.mxu0 0.0
    %779 = vmatprep.subr.mxu0 0.0
    %780 = vmatpush1.xpose.msra.mxu0 0.0
    %781 = vmatprep.subr.mxu0 0.0
    %782 = vmatpush1.xpose.msra.mxu0 0.0
    %783 = vmatprep.subr.mxu0 0.0
    %784 = vmatpush1.xpose.msra.mxu0 0.0
    %785 = vmatprep.subr.mxu0 0.0
    %786 = vmatpush1.xpose.msra.mxu0 0.0
    %787 = vmatprep.subr.mxu0 0.0
    %788 = vmatpush1.xpose.msra.mxu0 0.0
    %789 = vmatprep.subr.mxu0 0.0
    %790 = vmatpush1.xpose.msra.mxu0 0.0
    %791 = vmatprep.mubr.f32.mxu0 0.0
    %792 = vmatmul.mubr.f32.gmra.mrb[0].mxu0 %v723
    %v793 = vpop.f32.mrb[0].mxu0
    %v794 = vadd.f32 0.0, %v793
    %v795 = vpop.f32.mrb[0].mxu0
    %796 = vdwg.mxu0
    %v797 = vmul.f32 %v716, 0.35355338
    %v798 = vmul.f32 %v794, 0.35355338
    %v799 = vsel %vm306, %v797, -inf
    %800 = vmax.xlane.f32.xlu0 %v799
    %v801 = vpop.xlane.xlu0 %800
    %v802 = vsel %vm306, %v798, -inf
    %803 = vmax.xlane.f32.xlu0 %v802
    %v804 = vpop.xlane.xlu0 %803
    %v805 = vsub.f32 %v797, %v801
    %v806 = vsub.f32 %v798, %v804
    %v807 = vmul.f32 %v805, 1.442695
    %v808 = vpow.pop %v807
    %v809 = vmul.f32 %v806, 1.442695
    %v810 = vpow.pop %v809
    %v811 = vsel %vm306, %v808, 0.0
    %812 = vadd.xlane.f32.xlu0 %v811
    %v813 = vpop.xlane.xlu0 %812
    %v814 = vsel %vm306, %v810, 0.0
    %815 = vadd.xlane.f32.xlu0 %v814
    %v816 = vpop.xlane.xlu0 %815
    %v817 = vrcp.pop %v813
    %v818 = vrcp.pop %v816
    %v819 = vmul.f32 %v813, %v817
    %v820 = vmul.f32 %v816, %v818
    %v821 = vsub.f32 2.0, %v819
    %v822 = vsub.f32 2.0, %v820
    %v823 = vmul.f32 %v817, %v821
    %v824 = vmul.f32 %v818, %v822
    %v825 = vmul.f32 %v808, %v823
    %v826 = vmul.f32 %v810, %v824
    %v827 = vadd.f32 %v486, %v825
    %v828 = vadd.f32 %v487, %v826
    %829 = vrot.lane.b32.xlu0 %v295, 56
    %v830 = vpop.permute.xlu0 %829
    %v833 = vsel %vm306, %v825, 0
    %835 = vmatprep.subr.mxu0 0.0
    %836 = vmatpush1.msra.mxu0 %v830
    %837 = vmatprep.subr.mxu0 0.0
    %838 = vmatpush1.msra.mxu0 0.0
    %839 = vmatprep.subr.mxu0 0.0
    %840 = vmatpush1.msra.mxu0 0.0
    %841 = vmatprep.subr.mxu0 0.0
    %842 = vmatpush1.msra.mxu0 0.0
    %843 = vmatprep.subr.mxu0 0.0
    %844 = vmatpush1.msra.mxu0 0.0
    %845 = vmatprep.subr.mxu0 0.0
    %846 = vmatpush1.msra.mxu0 0.0
    %847 = vmatprep.subr.mxu0 0.0
    %848 = vmatpush1.msra.mxu0 0.0
    %849 = vmatprep.subr.mxu0 0.0
    %850 = vmatpush1.msra.mxu0 0.0
    %851 = vmatprep.subr.mxu0 0.0
    %852 = vmatpush1.msra.mxu0 0.0
    %853 = vmatprep.subr.mxu0 0.0
    %854 = vmatpush1.msra.mxu0 0.0
    %855 = vmatprep.subr.mxu0 0.0
    %856 = vmatpush1.msra.mxu0 0.0
    %857 = vmatprep.subr.mxu0 0.0
    %858 = vmatpush1.msra.mxu0 0.0
    %859 = vmatprep.subr.mxu0 0.0
    %860 = vmatpush1.msra.mxu0 0.0
    %861 = vmatprep.subr.mxu0 0.0
    %862 = vmatpush1.msra.mxu0 0.0
    %863 = vmatprep.subr.mxu0 0.0
    %864 = vmatpush1.msra.mxu0 0.0
    %865 = vmatprep.subr.mxu0 0.0
    %866 = vmatpush1.msra.mxu0 0.0
    %867 = vmatprep.subr.mxu0 0.0
    %868 = vmatpush1.msra.mxu0 0.0
    %869 = vmatprep.subr.mxu0 0.0
    %870 = vmatpush1.msra.mxu0 0.0
    %871 = vmatprep.subr.mxu0 0.0
    %872 = vmatpush1.msra.mxu0 0.0
    %873 = vmatprep.subr.mxu0 0.0
    %874 = vmatpush1.msra.mxu0 0.0
    %875 = vmatprep.subr.mxu0 0.0
    %876 = vmatpush1.msra.mxu0 0.0
    %877 = vmatprep.subr.mxu0 0.0
    %878 = vmatpush1.msra.mxu0 0.0
    %879 = vmatprep.subr.mxu0 0.0
    %880 = vmatpush1.msra.mxu0 0.0
    %881 = vmatprep.subr.mxu0 0.0
    %882 = vmatpush1.msra.mxu0 0.0
    %883 = vmatprep.subr.mxu0 0.0
    %884 = vmatpush1.msra.mxu0 0.0
    %885 = vmatprep.subr.mxu0 0.0
    %886 = vmatpush1.msra.mxu0 0.0
    %887 = vmatprep.subr.mxu0 0.0
    %888 = vmatpush1.msra.mxu0 0.0
    %889 = vmatprep.subr.mxu0 0.0
    %890 = vmatpush1.msra.mxu0 0.0
    %891 = vmatprep.subr.mxu0 0.0
    %892 = vmatpush1.msra.mxu0 0.0
    %893 = vmatprep.subr.mxu0 0.0
    %894 = vmatpush1.msra.mxu0 0.0
    %895 = vmatprep.subr.mxu0 0.0
    %896 = vmatpush1.msra.mxu0 0.0
    %897 = vmatprep.subr.mxu0 0.0
    %898 = vmatpush1.msra.mxu0 0.0
    %899 = vmatprep.mubr.f32.mxu0 0.0
    %900 = vmatmul.mubr.f32.gmra.mrb[0].mxu0 %v833
    %v901 = vpop.f32.mrb[0].mxu0
    %v902 = vadd.f32 0.0, %v901
    %v903 = vpop.f32.mrb[0].mxu0
    %904 = vdwg.mxu0
    %905 = vrot.lane.b32.xlu0 %v300, 56
    %v906 = vpop.permute.xlu0 %905
    %v909 = vsel %vm306, %v826, 0
    %911 = vmatprep.subr.mxu0 0.0
    %912 = vmatpush1.msra.mxu0 %v906
    %913 = vmatprep.subr.mxu0 0.0
    %914 = vmatpush1.msra.mxu0 0.0
    %915 = vmatprep.subr.mxu0 0.0
    %916 = vmatpush1.msra.mxu0 0.0
    %917 = vmatprep.subr.mxu0 0.0
    %918 = vmatpush1.msra.mxu0 0.0
    %919 = vmatprep.subr.mxu0 0.0
    %920 = vmatpush1.msra.mxu0 0.0
    %921 = vmatprep.subr.mxu0 0.0
    %922 = vmatpush1.msra.mxu0 0.0
    %923 = vmatprep.subr.mxu0 0.0
    %924 = vmatpush1.msra.mxu0 0.0
    %925 = vmatprep.subr.mxu0 0.0
    %926 = vmatpush1.msra.mxu0 0.0
    %927 = vmatprep.subr.mxu0 0.0
    %928 = vmatpush1.msra.mxu0 0.0
    %929 = vmatprep.subr.mxu0 0.0
    %930 = vmatpush1.msra.mxu0 0.0
    %931 = vmatprep.subr.mxu0 0.0
    %932 = vmatpush1.msra.mxu0 0.0
    %933 = vmatprep.subr.mxu0 0.0
    %934 = vmatpush1.msra.mxu0 0.0
    %935 = vmatprep.subr.mxu0 0.0
    %936 = vmatpush1.msra.mxu0 0.0
    %937 = vmatprep.subr.mxu0 0.0
    %938 = vmatpush1.msra.mxu0 0.0
    %939 = vmatprep.subr.mxu0 0.0
    %940 = vmatpush1.msra.mxu0 0.0
    %941 = vmatprep.subr.mxu0 0.0
    %942 = vmatpush1.msra.mxu0 0.0
    %943 = vmatprep.subr.mxu0 0.0
    %944 = vmatpush1.msra.mxu0 0.0
    %945 = vmatprep.subr.mxu0 0.0
    %946 = vmatpush1.msra.mxu0 0.0
    %947 = vmatprep.subr.mxu0 0.0
    %948 = vmatpush1.msra.mxu0 0.0
    %949 = vmatprep.subr.mxu0 0.0
    %950 = vmatpush1.msra.mxu0 0.0
    %951 = vmatprep.subr.mxu0 0.0
    %952 = vmatpush1.msra.mxu0 0.0
    %953 = vmatprep.subr.mxu0 0.0
    %954 = vmatpush1.msra.mxu0 0.0
    %955 = vmatprep.subr.mxu0 0.0
    %956 = vmatpush1.msra.mxu0 0.0
    %957 = vmatprep.subr.mxu0 0.0
    %958 = vmatpush1.msra.mxu0 0.0
    %959 = vmatprep.subr.mxu0 0.0
    %960 = vmatpush1.msra.mxu0 0.0
    %961 = vmatprep.subr.mxu0 0.0
    %962 = vmatpush1.msra.mxu0 0.0
    %963 = vmatprep.subr.mxu0 0.0
    %964 = vmatpush1.msra.mxu0 0.0
    %965 = vmatprep.subr.mxu0 0.0
    %966 = vmatpush1.msra.mxu0 0.0
    %967 = vmatprep.subr.mxu0 0.0
    %968 = vmatpush1.msra.mxu0 0.0
    %969 = vmatprep.subr.mxu0 0.0
    %970 = vmatpush1.msra.mxu0 0.0
    %971 = vmatprep.subr.mxu0 0.0
    %972 = vmatpush1.msra.mxu0 0.0
    %973 = vmatprep.subr.mxu0 0.0
    %974 = vmatpush1.msra.mxu0 0.0
    %975 = vmatprep.mubr.f32.mxu0 0.0
    %976 = vmatmul.mubr.f32.gmra.mrb[0].mxu0 %v909
    %v977 = vpop.f32.mrb[0].mxu0
    %v978 = vadd.f32 0.0, %v977
    %v979 = vpop.f32.mrb[0].mxu0
    %980 = vdwg.mxu0
    %v981 = vld [vmem:[#allocation8 + $0x8] sm:$0xff]
    %v983 = vsel %vm306, %v902, 0
    %v986 = vsel %vm306, %v978, 0
    %988 = vmatprep.subr.mxu0 0.0
    %989 = vmatpush1.msra.mxu0 %v981
    %990 = vmatprep.subr.mxu0 0.0
    %991 = vmatpush1.msra.mxu0 0.0
    %992 = vmatprep.subr.mxu0 0.0
    %993 = vmatpush1.msra.mxu0 0.0
    %994 = vmatprep.subr.mxu0 0.0
    %995 = vmatpush1.msra.mxu0 0.0
    %996 = vmatprep.subr.mxu0 0.0
    %997 = vmatpush1.msra.mxu0 0.0
    %998 = vmatprep.subr.mxu0 0.0
    %999 = vmatpush1.msra.mxu0 0.0
    %1000 = vmatprep.subr.mxu0 0.0
    %1001 = vmatpush1.msra.mxu0 0.0
    %1002 = vmatprep.subr.mxu0 0.0
    %1003 = vmatpush1.msra.mxu0 0.0
    %1004 = vmatprep.subr.mxu0 0.0
    %1005 = vmatpush1.msra.mxu0 0.0
    %1006 = vmatprep.subr.mxu0 0.0
    %1007 = vmatpush1.msra.mxu0 0.0
    %1008 = vmatprep.subr.mxu0 0.0
    %1009 = vmatpush1.msra.mxu0 0.0
    %1010 = vmatprep.subr.mxu0 0.0
    %1011 = vmatpush1.msra.mxu0 0.0
    %1012 = vmatprep.subr.mxu0 0.0
    %1013 = vmatpush1.msra.mxu0 0.0
    %1014 = vmatprep.subr.mxu0 0.0
    %1015 = vmatpush1.msra.mxu0 0.0
    %1016 = vmatprep.subr.mxu0 0.0
    %1017 = vmatpush1.msra.mxu0 0.0
    %1018 = vmatprep.subr.mxu0 0.0
    %1019 = vmatpush1.msra.mxu0 0.0
    %1020 = vmatprep.subr.mxu0 0.0
    %1021 = vmatpush1.msra.mxu0 0.0
    %1022 = vmatprep.subr.mxu0 0.0
    %1023 = vmatpush1.msra.mxu0 0.0
    %1024 = vmatprep.subr.mxu0 0.0
    %1025 = vmatpush1.msra.mxu0 0.0
    %1026 = vmatprep.subr.mxu0 0.0
    %1027 = vmatpush1.msra.mxu0 0.0
    %1028 = vmatprep.subr.mxu0 0.0
    %1029 = vmatpush1.msra.mxu0 0.0
    %1030 = vmatprep.subr.mxu0 0.0
    %1031 = vmatpush1.msra.mxu0 0.0
    %1032 = vmatprep.subr.mxu0 0.0
    %1033 = vmatpush1.msra.mxu0 0.0
    %1034 = vmatprep.subr.mxu0 0.0
    %1035 = vmatpush1.msra.mxu0 0.0
    %1036 = vmatprep.subr.mxu0 0.0
    %1037 = vmatpush1.msra.mxu0 0.0
    %1038 = vmatprep.subr.mxu0 0.0
    %1039 = vmatpush1.msra.mxu0 0.0
    %1040 = vmatprep.subr.mxu0 0.0
    %1041 = vmatpush1.msra.mxu0 0.0
    %1042 = vmatprep.subr.mxu0 0.0
    %1043 = vmatpush1.msra.mxu0 0.0
    %1044 = vmatprep.subr.mxu0 0.0
    %1045 = vmatpush1.msra.mxu0 0.0
    %1046 = vmatprep.subr.mxu0 0.0
    %1047 = vmatpush1.msra.mxu0 0.0
    %1048 = vmatprep.subr.mxu0 0.0
    %1049 = vmatpush1.msra.mxu0 0.0
    %1050 = vmatprep.subr.mxu0 0.0
    %1051 = vmatpush1.msra.mxu0 0.0
    %1052 = vmatprep.mubr.f32.mxu0 0.0
    %1053 = vmatmul.mubr.f32.gmra.mrb[0].mxu0 %v983
    %v1054 = vpop.f32.mrb[0].mxu0
    %v1055 = vadd.f32 0.0, %v1054
    %v1056 = vpop.f32.mrb[0].mxu0
    %1057 = vmatprep.mubr.f32.mxu0 0.0
    %1058 = vmatmul.mubr.f32.gmra.mrb[0].mxu0 %v986
    %v1059 = vpop.f32.mrb[0].mxu0
    %v1060 = vadd.f32 0.0, %v1059
    %v1061 = vpop.f32.mrb[0].mxu0
    %1062 = vdwg.mxu0
    %v1064 = vsel %vm306, %v561, 0
    %v1067 = vsel %vm306, %v637, 0
    %1069 = vmatprep.subr.mxu0 0.0
    %1070 = vmatpush1.msra.mxu0 %v640
    %1071 = vmatprep.subr.mxu0 0.0
    %1072 = vmatpush1.msra.mxu0 0.0
    %1073 = vmatprep.subr.mxu0 0.0
    %1074 = vmatpush1.msra.mxu0 0.0
    %1075 = vmatprep.subr.mxu0 0.0
    %1076 = vmatpush1.msra.mxu0 0.0
    %1077 = vmatprep.subr.mxu0 0.0
    %1078 = vmatpush1.msra.mxu0 0.0
    %1079 = vmatprep.subr.mxu0 0.0
    %1080 = vmatpush1.msra.mxu0 0.0
    %1081 = vmatprep.subr.mxu0 0.0
    %1082 = vmatpush1.msra.mxu0 0.0
    %1083 = vmatprep.subr.mxu0 0.0
    %1084 = vmatpush1.msra.mxu0 0.0
    %1085 = vmatprep.subr.mxu0 0.0
    %1086 = vmatpush1.msra.mxu0 0.0
    %1087 = vmatprep.subr.mxu0 0.0
    %1088 = vmatpush1.msra.mxu0 0.0
    %1089 = vmatprep.subr.mxu0 0.0
    %1090 = vmatpush1.msra.mxu0 0.0
    %1091 = vmatprep.subr.mxu0 0.0
    %1092 = vmatpush1.msra.mxu0 0.0
    %1093 = vmatprep.subr.mxu0 0.0
    %1094 = vmatpush1.msra.mxu0 0.0
    %1095 = vmatprep.subr.mxu0 0.0
    %1096 = vmatpush1.msra.mxu0 0.0
    %1097 = vmatprep.subr.mxu0 0.0
    %1098 = vmatpush1.msra.mxu0 0.0
    %1099 = vmatprep.subr.mxu0 0.0
    %1100 = vmatpush1.msra.mxu0 0.0
    %1101 = vmatprep.subr.mxu0 0.0
    %1102 = vmatpush1.msra.mxu0 0.0
    %1103 = vmatprep.subr.mxu0 0.0
    %1104 = vmatpush1.msra.mxu0 0.0
    %1105 = vmatprep.subr.mxu0 0.0
    %1106 = vmatpush1.msra.mxu0 0.0
    %1107 = vmatprep.subr.mxu0 0.0
    %1108 = vmatpush1.msra.mxu0 0.0
    %1109 = vmatprep.subr.mxu0 0.0
    %1110 = vmatpush1.msra.mxu0 0.0
    %1111 = vmatprep.subr.mxu0 0.0
    %1112 = vmatpush1.msra.mxu0 0.0
    %1113 = vmatprep.subr.mxu0 0.0
    %1114 = vmatpush1.msra.mxu0 0.0
    %1115 = vmatprep.subr.mxu0 0.0
    %1116 = vmatpush1.msra.mxu0 0.0
    %1117 = vmatprep.subr.mxu0 0.0
    %1118 = vmatpush1.msra.mxu0 0.0
    %1119 = vmatprep.subr.mxu0 0.0
    %1120 = vmatpush1.msra.mxu0 0.0
    %1121 = vmatprep.subr.mxu0 0.0
    %1122 = vmatpush1.msra.mxu0 0.0
    %1123 = vmatprep.subr.mxu0 0.0
    %1124 = vmatpush1.msra.mxu0 0.0
    %1125 = vmatprep.subr.mxu0 0.0
    %1126 = vmatpush1.msra.mxu0 0.0
    %1127 = vmatprep.subr.mxu0 0.0
    %1128 = vmatpush1.msra.mxu0 0.0
    %1129 = vmatprep.subr.mxu0 0.0
    %1130 = vmatpush1.msra.mxu0 0.0
    %1131 = vmatprep.subr.mxu0 0.0
    %1132 = vmatpush1.msra.mxu0 0.0
    %1133 = vmatprep.mubr.f32.mxu0 0.0
    %1134 = vmatmul.mubr.f32.gmra.mrb[0].mxu0 %v1064
    %v1135 = vpop.f32.mrb[0].mxu0
    %v1136 = vadd.f32 %v1055, %v1135
    %v1137 = vpop.f32.mrb[0].mxu0
    %1138 = vmatprep.mubr.f32.mxu0 0.0
    %1139 = vmatmul.mubr.f32.gmra.mrb[0].mxu0 %v1067
    %v1140 = vpop.f32.mrb[0].mxu0
    %v1141 = vadd.f32 %v1060, %v1140
    %v1142 = vpop.f32.mrb[0].mxu0
    %1143 = vdwg.mxu0
    %1144 = vrot.lane.b32.xlu0 %v295, 112
    %v1145 = vpop.permute.xlu0 %1144
    %1146 = vrot.lane.b32.xlu0 %v295, 80
    %v1147 = vpop.permute.xlu0 %1146
    %v1148 = vsel %vm306, %v1145, 0
    %v1150 = vsel %vm306, %v1147, 0
    %1152 = vmatprep.subr.mxu0 0.0
    %1153 = vmatpush1.xpose.msra.mxu0 %v1150
    %1154 = vmatprep.subr.mxu0 0.0
    %1155 = vmatpush1.xpose.msra.mxu0 0.0
    %1156 = vmatprep.subr.mxu0 0.0
    %1157 = vmatpush1.xpose.msra.mxu0 0.0
    %1158 = vmatprep.subr.mxu0 0.0
    %1159 = vmatpush1.xpose.msra.mxu0 0.0
    %1160 = vmatprep.subr.mxu0 0.0
    %1161 = vmatpush1.xpose.msra.mxu0 0.0
    %1162 = vmatprep.subr.mxu0 0.0
    %1163 = vmatpush1.xpose.msra.mxu0 0.0
    %1164 = vmatprep.subr.mxu0 0.0
    %1165 = vmatpush1.xpose.msra.mxu0 0.0
    %1166 = vmatprep.subr.mxu0 0.0
    %1167 = vmatpush1.xpose.msra.mxu0 0.0
    %1168 = vmatprep.subr.mxu0 0.0
    %1169 = vmatpush1.xpose.msra.mxu0 0.0
    %1170 = vmatprep.subr.mxu0 0.0
    %1171 = vmatpush1.xpose.msra.mxu0 0.0
    %1172 = vmatprep.subr.mxu0 0.0
    %1173 = vmatpush1.xpose.msra.mxu0 0.0
    %1174 = vmatprep.subr.mxu0 0.0
    %1175 = vmatpush1.xpose.msra.mxu0 0.0
    %1176 = vmatprep.subr.mxu0 0.0
    %1177 = vmatpush1.xpose.msra.mxu0 0.0
    %1178 = vmatprep.subr.mxu0 0.0
    %1179 = vmatpush1.xpose.msra.mxu0 0.0
    %1180 = vmatprep.subr.mxu0 0.0
    %1181 = vmatpush1.xpose.msra.mxu0 0.0
    %1182 = vmatprep.subr.mxu0 0.0
    %1183 = vmatpush1.xpose.msra.mxu0 0.0
    %1184 = vmatprep.subr.mxu0 0.0
    %1185 = vmatpush1.xpose.msra.mxu0 0.0
    %1186 = vmatprep.subr.mxu0 0.0
    %1187 = vmatpush1.xpose.msra.mxu0 0.0
    %1188 = vmatprep.subr.mxu0 0.0
    %1189 = vmatpush1.xpose.msra.mxu0 0.0
    %1190 = vmatprep.subr.mxu0 0.0
    %1191 = vmatpush1.xpose.msra.mxu0 0.0
    %1192 = vmatprep.subr.mxu0 0.0
    %1193 = vmatpush1.xpose.msra.mxu0 0.0
    %1194 = vmatprep.subr.mxu0 0.0
    %1195 = vmatpush1.xpose.msra.mxu0 0.0
    %1196 = vmatprep.subr.mxu0 0.0
    %1197 = vmatpush1.xpose.msra.mxu0 0.0
    %1198 = vmatprep.subr.mxu0 0.0
    %1199 = vmatpush1.xpose.msra.mxu0 0.0
    %1200 = vmatprep.subr.mxu0 0.0
    %1201 = vmatpush1.xpose.msra.mxu0 0.0
    %1202 = vmatprep.subr.mxu0 0.0
    %1203 = vmatpush1.xpose.msra.mxu0 0.0
    %1204 = vmatprep.subr.mxu0 0.0
    %1205 = vmatpush1.xpose.msra.mxu0 0.0
    %1206 = vmatprep.subr.mxu0 0.0
    %1207 = vmatpush1.xpose.msra.mxu0 0.0
    %1208 = vmatprep.subr.mxu0 0.0
    %1209 = vmatpush1.xpose.msra.mxu0 0.0
    %1210 = vmatprep.subr.mxu0 0.0
    %1211 = vmatpush1.xpose.msra.mxu0 0.0
    %1212 = vmatprep.subr.mxu0 0.0
    %1213 = vmatpush1.xpose.msra.mxu0 0.0
    %1214 = vmatprep.subr.mxu0 0.0
    %1215 = vmatpush1.xpose.msra.mxu0 0.0
    %1216 = vmatprep.mubr.f32.mxu0 0.0
    %1217 = vmatmul.mubr.f32.gmra.mrb[0].mxu0 %v1148
    %v1218 = vpop.f32.mrb[0].mxu0
    %v1219 = vadd.f32 0.0, %v1218
    %v1220 = vpop.f32.mrb[0].mxu0
    %1221 = vdwg.mxu0
    %1222 = vrot.lane.b32.xlu0 %v300, 112
    %v1223 = vpop.permute.xlu0 %1222
    %1224 = vrot.lane.b32.xlu0 %v300, 80
    %v1225 = vpop.permute.xlu0 %1224
    %v1226 = vsel %vm306, %v1223, 0
    %v1228 = vsel %vm306, %v1225, 0
    %1230 = vmatprep.subr.mxu0 0.0
    %1231 = vmatpush1.xpose.msra.mxu0 %v1228
    %1232 = vmatprep.subr.mxu0 0.0
    %1233 = vmatpush1.xpose.msra.mxu0 0.0
    %1234 = vmatprep.subr.mxu0 0.0
    %1235 = vmatpush1.xpose.msra.mxu0 0.0
    %1236 = vmatprep.subr.mxu0 0.0
    %1237 = vmatpush1.xpose.msra.mxu0 0.0
    %1238 = vmatprep.subr.mxu0 0.0
    %1239 = vmatpush1.xpose.msra.mxu0 0.0
    %1240 = vmatprep.subr.mxu0 0.0
    %1241 = vmatpush1.xpose.msra.mxu0 0.0
    %1242 = vmatprep.subr.mxu0 0.0
    %1243 = vmatpush1.xpose.msra.mxu0 0.0
    %1244 = vmatprep.subr.mxu0 0.0
    %1245 = vmatpush1.xpose.msra.mxu0 0.0
    %1246 = vmatprep.subr.mxu0 0.0
    %1247 = vmatpush1.xpose.msra.mxu0 0.0
    %1248 = vmatprep.subr.mxu0 0.0
    %1249 = vmatpush1.xpose.msra.mxu0 0.0
    %1250 = vmatprep.subr.mxu0 0.0
    %1251 = vmatpush1.xpose.msra.mxu0 0.0
    %1252 = vmatprep.subr.mxu0 0.0
    %1253 = vmatpush1.xpose.msra.mxu0 0.0
    %1254 = vmatprep.subr.mxu0 0.0
    %1255 = vmatpush1.xpose.msra.mxu0 0.0
    %1256 = vmatprep.subr.mxu0 0.0
    %1257 = vmatpush1.xpose.msra.mxu0 0.0
    %1258 = vmatprep.subr.mxu0 0.0
    %1259 = vmatpush1.xpose.msra.mxu0 0.0
    %1260 = vmatprep.subr.mxu0 0.0
    %1261 = vmatpush1.xpose.msra.mxu0 0.0
    %1262 = vmatprep.subr.mxu0 0.0
    %1263 = vmatpush1.xpose.msra.mxu0 0.0
    %1264 = vmatprep.subr.mxu0 0.0
    %1265 = vmatpush1.xpose.msra.mxu0 0.0
    %1266 = vmatprep.subr.mxu0 0.0
    %1267 = vmatpush1.xpose.msra.mxu0 0.0
    %1268 = vmatprep.subr.mxu0 0.0
    %1269 = vmatpush1.xpose.msra.mxu0 0.0
    %1270 = vmatprep.subr.mxu0 0.0
    %1271 = vmatpush1.xpose.msra.mxu0 0.0
    %1272 = vmatprep.subr.mxu0 0.0
    %1273 = vmatpush1.xpose.msra.mxu0 0.0
    %1274 = vmatprep.subr.mxu0 0.0
    %1275 = vmatpush1.xpose.msra.mxu0 0.0
    %1276 = vmatprep.subr.mxu0 0.0
    %1277 = vmatpush1.xpose.msra.mxu0 0.0
    %1278 = vmatprep.subr.mxu0 0.0
    %1279 = vmatpush1.xpose.msra.mxu0 0.0
    %1280 = vmatprep.subr.mxu0 0.0
    %1281 = vmatpush1.xpose.msra.mxu0 0.0
    %1282 = vmatprep.subr.mxu0 0.0
    %1283 = vmatpush1.xpose.msra.mxu0 0.0
    %1284 = vmatprep.subr.mxu0 0.0
    %1285 = vmatpush1.xpose.msra.mxu0 0.0
    %1286 = vmatprep.subr.mxu0 0.0
    %1287 = vmatpush1.xpose.msra.mxu0 0.0
    %1288 = vmatprep.subr.mxu0 0.0
    %1289 = vmatpush1.xpose.msra.mxu0 0.0
    %1290 = vmatprep.subr.mxu0 0.0
    %1291 = vmatpush1.xpose.msra.mxu0 0.0
    %1292 = vmatprep.subr.mxu0 0.0
    %1293 = vmatpush1.xpose.msra.mxu0 0.0
    %1294 = vmatprep.mubr.f32.mxu0 0.0
    %1295 = vmatmul.mubr.f32.gmra.mrb[0].mxu0 %v1226
    %v1296 = vpop.f32.mrb[0].mxu0
    %v1297 = vadd.f32 0.0, %v1296
    %v1298 = vpop.f32.mrb[0].mxu0
    %1299 = vdwg.mxu0
    %v1300 = vmul.f32 %v1219, 0.35355338
    %v1301 = vmul.f32 %v1297, 0.35355338
    %v1302 = vsel %vm306, %v1300, -inf
    %1303 = vmax.xlane.f32.xlu0 %v1302
    %v1304 = vpop.xlane.xlu0 %1303
    %v1305 = vsel %vm306, %v1301, -inf
    %1306 = vmax.xlane.f32.xlu0 %v1305
    %v1307 = vpop.xlane.xlu0 %1306
    %v1308 = vsub.f32 %v1300, %v1304
    %v1309 = vsub.f32 %v1301, %v1307
    %v1310 = vmul.f32 %v1308, 1.442695
    %v1311 = vpow.pop %v1310
    %v1312 = vmul.f32 %v1309, 1.442695
    %v1313 = vpow.pop %v1312
    %v1314 = vsel %vm306, %v1311, 0.0
    %1315 = vadd.xlane.f32.xlu0 %v1314
    %v1316 = vpop.xlane.xlu0 %1315
    %v1317 = vsel %vm306, %v1313, 0.0
    %1318 = vadd.xlane.f32.xlu0 %v1317
    %v1319 = vpop.xlane.xlu0 %1318
    %v1320 = vrcp.pop %v1316
    %v1321 = vrcp.pop %v1319
    %v1322 = vmul.f32 %v1316, %v1320
    %v1323 = vmul.f32 %v1319, %v1321
    %v1324 = vsub.f32 2.0, %v1322
    %v1325 = vsub.f32 2.0, %v1323
    %v1326 = vmul.f32 %v1320, %v1324
    %v1327 = vmul.f32 %v1321, %v1325
    %v1328 = vmul.f32 %v1311, %v1326
    %v1329 = vmul.f32 %v1313, %v1327
    %v1330 = vadd.f32 %v827, %v1328
    %v1331 = vadd.f32 %v828, %v1329
    %1332 = vrot.lane.b32.xlu0 %v295, 48
    %v1333 = vpop.permute.xlu0 %1332
    %v1336 = vsel %vm306, %v1328, 0
    %1338 = vmatprep.subr.mxu0 0.0
    %1339 = vmatpush1.msra.mxu0 %v1333
    %1340 = vmatprep.subr.mxu0 0.0
    %1341 = vmatpush1.msra.mxu0 0.0
    %1342 = vmatprep.subr.mxu0 0.0
    %1343 = vmatpush1.msra.mxu0 0.0
    %1344 = vmatprep.subr.mxu0 0.0
    %1345 = vmatpush1.msra.mxu0 0.0
    %1346 = vmatprep.subr.mxu0 0.0
    %1347 = vmatpush1.msra.mxu0 0.0
    %1348 = vmatprep.subr.mxu0 0.0
    %1349 = vmatpush1.msra.mxu0 0.0
    %1350 = vmatprep.subr.mxu0 0.0
    %1351 = vmatpush1.msra.mxu0 0.0
    %1352 = vmatprep.subr.mxu0 0.0
    %1353 = vmatpush1.msra.mxu0 0.0
    %1354 = vmatprep.subr.mxu0 0.0
    %1355 = vmatpush1.msra.mxu0 0.0
    %1356 = vmatprep.subr.mxu0 0.0
    %1357 = vmatpush1.msra.mxu0 0.0
    %1358 = vmatprep.subr.mxu0 0.0
    %1359 = vmatpush1.msra.mxu0 0.0
    %1360 = vmatprep.subr.mxu0 0.0
    %1361 = vmatpush1.msra.mxu0 0.0
    %1362 = vmatprep.subr.mxu0 0.0
    %1363 = vmatpush1.msra.mxu0 0.0
    %1364 = vmatprep.subr.mxu0 0.0
    %1365 = vmatpush1.msra.mxu0 0.0
    %1366 = vmatprep.subr.mxu0 0.0
    %1367 = vmatpush1.msra.mxu0 0.0
    %1368 = vmatprep.subr.mxu0 0.0
    %1369 = vmatpush1.msra.mxu0 0.0
    %1370 = vmatprep.subr.mxu0 0.0
    %1371 = vmatpush1.msra.mxu0 0.0
    %1372 = vmatprep.subr.mxu0 0.0
    %1373 = vmatpush1.msra.mxu0 0.0
    %1374 = vmatprep.subr.mxu0 0.0
    %1375 = vmatpush1.msra.mxu0 0.0
    %1376 = vmatprep.subr.mxu0 0.0
    %1377 = vmatpush1.msra.mxu0 0.0
    %1378 = vmatprep.subr.mxu0 0.0
    %1379 = vmatpush1.msra.mxu0 0.0
    %1380 = vmatprep.subr.mxu0 0.0
    %1381 = vmatpush1.msra.mxu0 0.0
    %1382 = vmatprep.subr.mxu0 0.0
    %1383 = vmatpush1.msra.mxu0 0.0
    %1384 = vmatprep.subr.mxu0 0.0
    %1385 = vmatpush1.msra.mxu0 0.0
    %1386 = vmatprep.subr.mxu0 0.0
    %1387 = vmatpush1.msra.mxu0 0.0
    %1388 = vmatprep.subr.mxu0 0.0
    %1389 = vmatpush1.msra.mxu0 0.0
    %1390 = vmatprep.subr.mxu0 0.0
    %1391 = vmatpush1.msra.mxu0 0.0
    %1392 = vmatprep.subr.mxu0 0.0
    %1393 = vmatpush1.msra.mxu0 0.0
    %1394 = vmatprep.subr.mxu0 0.0
    %1395 = vmatpush1.msra.mxu0 0.0
    %1396 = vmatprep.subr.mxu0 0.0
    %1397 = vmatpush1.msra.mxu0 0.0
    %1398 = vmatprep.subr.mxu0 0.0
    %1399 = vmatpush1.msra.mxu0 0.0
    %1400 = vmatprep.subr.mxu0 0.0
    %1401 = vmatpush1.msra.mxu0 0.0
    %1402 = vmatprep.mubr.f32.mxu0 0.0
    %1403 = vmatmul.mubr.f32.gmra.mrb[0].mxu0 %v1336
    %v1404 = vpop.f32.mrb[0].mxu0
    %v1405 = vadd.f32 0.0, %v1404
    %v1406 = vpop.f32.mrb[0].mxu0
    %1407 = vdwg.mxu0
    %1408 = vrot.lane.b32.xlu0 %v300, 48
    %v1409 = vpop.permute.xlu0 %1408
    %v1412 = vsel %vm306, %v1329, 0
    %1414 = vmatprep.subr.mxu0 0.0
    %1415 = vmatpush1.msra.mxu0 %v1409
    %1416 = vmatprep.subr.mxu0 0.0
    %1417 = vmatpush1.msra.mxu0 0.0
    %1418 = vmatprep.subr.mxu0 0.0
    %1419 = vmatpush1.msra.mxu0 0.0
    %1420 = vmatprep.subr.mxu0 0.0
    %1421 = vmatpush1.msra.mxu0 0.0
    %1422 = vmatprep.subr.mxu0 0.0
    %1423 = vmatpush1.msra.mxu0 0.0
    %1424 = vmatprep.subr.mxu0 0.0
    %1425 = vmatpush1.msra.mxu0 0.0
    %1426 = vmatprep.subr.mxu0 0.0
    %1427 = vmatpush1.msra.mxu0 0.0
    %1428 = vmatprep.subr.mxu0 0.0
    %1429 = vmatpush1.msra.mxu0 0.0
    %1430 = vmatprep.subr.mxu0 0.0
    %1431 = vmatpush1.msra.mxu0 0.0
    %1432 = vmatprep.subr.mxu0 0.0
    %1433 = vmatpush1.msra.mxu0 0.0
    %1434 = vmatprep.subr.mxu0 0.0
    %1435 = vmatpush1.msra.mxu0 0.0
    %1436 = vmatprep.subr.mxu0 0.0
    %1437 = vmatpush1.msra.mxu0 0.0
    %1438 = vmatprep.subr.mxu0 0.0
    %1439 = vmatpush1.msra.mxu0 0.0
    %1440 = vmatprep.subr.mxu0 0.0
    %1441 = vmatpush1.msra.mxu0 0.0
    %1442 = vmatprep.subr.mxu0 0.0
    %1443 = vmatpush1.msra.mxu0 0.0
    %1444 = vmatprep.subr.mxu0 0.0
    %1445 = vmatpush1.msra.mxu0 0.0
    %1446 = vmatprep.subr.mxu0 0.0
    %1447 = vmatpush1.msra.mxu0 0.0
    %1448 = vmatprep.subr.mxu0 0.0
    %1449 = vmatpush1.msra.mxu0 0.0
    %1450 = vmatprep.subr.mxu0 0.0
    %1451 = vmatpush1.msra.mxu0 0.0
    %1452 = vmatprep.subr.mxu0 0.0
    %1453 = vmatpush1.msra.mxu0 0.0
    %1454 = vmatprep.subr.mxu0 0.0
    %1455 = vmatpush1.msra.mxu0 0.0
    %1456 = vmatprep.subr.mxu0 0.0
    %1457 = vmatpush1.msra.mxu0 0.0
    %1458 = vmatprep.subr.mxu0 0.0
    %1459 = vmatpush1.msra.mxu0 0.0
    %1460 = vmatprep.subr.mxu0 0.0
    %1461 = vmatpush1.msra.mxu0 0.0
    %1462 = vmatprep.subr.mxu0 0.0
    %1463 = vmatpush1.msra.mxu0 0.0
    %1464 = vmatprep.subr.mxu0 0.0
    %1465 = vmatpush1.msra.mxu0 0.0
    %1466 = vmatprep.subr.mxu0 0.0
    %1467 = vmatpush1.msra.mxu0 0.0
    %1468 = vmatprep.subr.mxu0 0.0
    %1469 = vmatpush1.msra.mxu0 0.0
    %1470 = vmatprep.subr.mxu0 0.0
    %1471 = vmatpush1.msra.mxu0 0.0
    %1472 = vmatprep.subr.mxu0 0.0
    %1473 = vmatpush1.msra.mxu0 0.0
    %1474 = vmatprep.subr.mxu0 0.0
    %1475 = vmatpush1.msra.mxu0 0.0
    %1476 = vmatprep.subr.mxu0 0.0
    %1477 = vmatpush1.msra.mxu0 0.0
    %1478 = vmatprep.mubr.f32.mxu0 0.0
    %1479 = vmatmul.mubr.f32.gmra.mrb[0].mxu0 %v1412
    %v1480 = vpop.f32.mrb[0].mxu0
    %v1481 = vadd.f32 0.0, %v1480
    %v1482 = vpop.f32.mrb[0].mxu0
    %1483 = vdwg.mxu0
    %v1484 = vld [vmem:[#allocation8 + $0x10] sm:$0xff]
    %v1486 = vsel %vm306, %v1405, 0
    %v1489 = vsel %vm306, %v1481, 0
    %1491 = vmatprep.subr.mxu0 0.0
    %1492 = vmatpush1.msra.mxu0 %v1484
    %1493 = vmatprep.subr.mxu0 0.0
    %1494 = vmatpush1.msra.mxu0 0.0
    %1495 = vmatprep.subr.mxu0 0.0
    %1496 = vmatpush1.msra.mxu0 0.0
    %1497 = vmatprep.subr.mxu0 0.0
    %1498 = vmatpush1.msra.mxu0 0.0
    %1499 = vmatprep.subr.mxu0 0.0
    %1500 = vmatpush1.msra.mxu0 0.0
    %1501 = vmatprep.subr.mxu0 0.0
    %1502 = vmatpush1.msra.mxu0 0.0
    %1503 = vmatprep.subr.mxu0 0.0
    %1504 = vmatpush1.msra.mxu0 0.0
    %1505 = vmatprep.subr.mxu0 0.0
    %1506 = vmatpush1.msra.mxu0 0.0
    %1507 = vmatprep.subr.mxu0 0.0
    %1508 = vmatpush1.msra.mxu0 0.0
    %1509 = vmatprep.subr.mxu0 0.0
    %1510 = vmatpush1.msra.mxu0 0.0
    %1511 = vmatprep.subr.mxu0 0.0
    %1512 = vmatpush1.msra.mxu0 0.0
    %1513 = vmatprep.subr.mxu0 0.0
    %1514 = vmatpush1.msra.mxu0 0.0
    %1515 = vmatprep.subr.mxu0 0.0
    %1516 = vmatpush1.msra.mxu0 0.0
    %1517 = vmatprep.subr.mxu0 0.0
    %1518 = vmatpush1.msra.mxu0 0.0
    %1519 = vmatprep.subr.mxu0 0.0
    %1520 = vmatpush1.msra.mxu0 0.0
    %1521 = vmatprep.subr.mxu0 0.0
    %1522 = vmatpush1.msra.mxu0 0.0
    %1523 = vmatprep.subr.mxu0 0.0
    %1524 = vmatpush1.msra.mxu0 0.0
    %1525 = vmatprep.subr.mxu0 0.0
    %1526 = vmatpush1.msra.mxu0 0.0
    %1527 = vmatprep.subr.mxu0 0.0
    %1528 = vmatpush1.msra.mxu0 0.0
    %1529 = vmatprep.subr.mxu0 0.0
    %1530 = vmatpush1.msra.mxu0 0.0
    %1531 = vmatprep.subr.mxu0 0.0
    %1532 = vmatpush1.msra.mxu0 0.0
    %1533 = vmatprep.subr.mxu0 0.0
    %1534 = vmatpush1.msra.mxu0 0.0
    %1535 = vmatprep.subr.mxu0 0.0
    %1536 = vmatpush1.msra.mxu0 0.0
    %1537 = vmatprep.subr.mxu0 0.0
    %1538 = vmatpush1.msra.mxu0 0.0
    %1539 = vmatprep.subr.mxu0 0.0
    %1540 = vmatpush1.msra.mxu0 0.0
    %1541 = vmatprep.subr.mxu0 0.0
    %1542 = vmatpush1.msra.mxu0 0.0
    %1543 = vmatprep.subr.mxu0 0.0
    %1544 = vmatpush1.msra.mxu0 0.0
    %1545 = vmatprep.subr.mxu0 0.0
    %1546 = vmatpush1.msra.mxu0 0.0
    %1547 = vmatprep.subr.mxu0 0.0
    %1548 = vmatpush1.msra.mxu0 0.0
    %1549 = vmatprep.subr.mxu0 0.0
    %1550 = vmatpush1.msra.mxu0 0.0
    %1551 = vmatprep.subr.mxu0 0.0
    %1552 = vmatpush1.msra.mxu0 0.0
    %1553 = vmatprep.subr.mxu0 0.0
    %1554 = vmatpush1.msra.mxu0 0.0
    %1555 = vmatprep.mubr.f32.mxu0 0.0
    %1556 = vmatmul.mubr.f32.gmra.mrb[0].mxu0 %v1486
    %v1557 = vpop.f32.mrb[0].mxu0
    %v1558 = vadd.f32 0.0, %v1557
    %v1559 = vpop.f32.mrb[0].mxu0
    %1560 = vmatprep.mubr.f32.mxu0 0.0
    %1561 = vmatmul.mubr.f32.gmra.mrb[0].mxu0 %v1489
    %v1562 = vpop.f32.mrb[0].mxu0
    %v1563 = vadd.f32 0.0, %v1562
    %v1564 = vpop.f32.mrb[0].mxu0
    %1565 = vdwg.mxu0
    %v1566 = vadd.f32 %v1136, %v1558
    %v1567 = vadd.f32 %v1141, %v1563
    %1568 = vrot.lane.b32.xlu0 %v295, 104
    %v1569 = vpop.permute.xlu0 %1568
    %1570 = vrot.lane.b32.xlu0 %v295, 72
    %v1571 = vpop.permute.xlu0 %1570
    %v1572 = vsel %vm306, %v1569, 0
    %v1574 = vsel %vm306, %v1571, 0
    %1576 = vmatprep.subr.mxu0 0.0
    %1577 = vmatpush1.xpose.msra.mxu0 %v1574
    %1578 = vmatprep.subr.mxu0 0.0
    %1579 = vmatpush1.xpose.msra.mxu0 0.0
    %1580 = vmatprep.subr.mxu0 0.0
    %1581 = vmatpush1.xpose.msra.mxu0 0.0
    %1582 = vmatprep.subr.mxu0 0.0
    %1583 = vmatpush1.xpose.msra.mxu0 0.0
    %1584 = vmatprep.subr.mxu0 0.0
    %1585 = vmatpush1.xpose.msra.mxu0 0.0
    %1586 = vmatprep.subr.mxu0 0.0
    %1587 = vmatpush1.xpose.msra.mxu0 0.0
    %1588 = vmatprep.subr.mxu0 0.0
    %1589 = vmatpush1.xpose.msra.mxu0 0.0
    %1590 = vmatprep.subr.mxu0 0.0
    %1591 = vmatpush1.xpose.msra.mxu0 0.0
    %1592 = vmatprep.subr.mxu0 0.0
    %1593 = vmatpush1.xpose.msra.mxu0 0.0
    %1594 = vmatprep.subr.mxu0 0.0
    %1595 = vmatpush1.xpose.msra.mxu0 0.0
    %1596 = vmatprep.subr.mxu0 0.0
    %1597 = vmatpush1.xpose.msra.mxu0 0.0
    %1598 = vmatprep.subr.mxu0 0.0
    %1599 = vmatpush1.xpose.msra.mxu0 0.0
    %1600 = vmatprep.subr.mxu0 0.0
    %1601 = vmatpush1.xpose.msra.mxu0 0.0
    %1602 = vmatprep.subr.mxu0 0.0
    %1603 = vmatpush1.xpose.msra.mxu0 0.0
    %1604 = vmatprep.subr.mxu0 0.0
    %1605 = vmatpush1.xpose.msra.mxu0 0.0
    %1606 = vmatprep.subr.mxu0 0.0
    %1607 = vmatpush1.xpose.msra.mxu0 0.0
    %1608 = vmatprep.subr.mxu0 0.0
    %1609 = vmatpush1.xpose.msra.mxu0 0.0
    %1610 = vmatprep.subr.mxu0 0.0
    %1611 = vmatpush1.xpose.msra.mxu0 0.0
    %1612 = vmatprep.subr.mxu0 0.0
    %1613 = vmatpush1.xpose.msra.mxu0 0.0
    %1614 = vmatprep.subr.mxu0 0.0
    %1615 = vmatpush1.xpose.msra.mxu0 0.0
    %1616 = vmatprep.subr.mxu0 0.0
    %1617 = vmatpush1.xpose.msra.mxu0 0.0
    %1618 = vmatprep.subr.mxu0 0.0
    %1619 = vmatpush1.xpose.msra.mxu0 0.0
    %1620 = vmatprep.subr.mxu0 0.0
    %1621 = vmatpush1.xpose.msra.mxu0 0.0
    %1622 = vmatprep.subr.mxu0 0.0
    %1623 = vmatpush1.xpose.msra.mxu0 0.0
    %1624 = vmatprep.subr.mxu0 0.0
    %1625 = vmatpush1.xpose.msra.mxu0 0.0
    %1626 = vmatprep.subr.mxu0 0.0
    %1627 = vmatpush1.xpose.msra.mxu0 0.0
    %1628 = vmatprep.subr.mxu0 0.0
    %1629 = vmatpush1.xpose.msra.mxu0 0.0
    %1630 = vmatprep.subr.mxu0 0.0
    %1631 = vmatpush1.xpose.msra.mxu0 0.0
    %1632 = vmatprep.subr.mxu0 0.0
    %1633 = vmatpush1.xpose.msra.mxu0 0.0
    %1634 = vmatprep.subr.mxu0 0.0
    %1635 = vmatpush1.xpose.msra.mxu0 0.0
    %1636 = vmatprep.subr.mxu0 0.0
    %1637 = vmatpush1.xpose.msra.mxu0 0.0
    %1638 = vmatprep.subr.mxu0 0.0
    %1639 = vmatpush1.xpose.msra.mxu0 0.0
    %1640 = vmatprep.mubr.f32.mxu0 0.0
    %1641 = vmatmul.mubr.f32.gmra.mrb[0].mxu0 %v1572
    %v1642 = vpop.f32.mrb[0].mxu0
    %v1643 = vadd.f32 0.0, %v1642
    %v1644 = vpop.f32.mrb[0].mxu0
    %1645 = vdwg.mxu0
    %1646 = vrot.lane.b32.xlu0 %v300, 104
    %v1647 = vpop.permute.xlu0 %1646
    %1648 = vrot.lane.b32.xlu0 %v300, 72
    %v1649 = vpop.permute.xlu0 %1648
    %v1650 = vsel %vm306, %v1647, 0
    %v1652 = vsel %vm306, %v1649, 0
    %1654 = vmatprep.subr.mxu0 0.0
    %1655 = vmatpush1.xpose.msra.mxu0 %v1652
    %1656 = vmatprep.subr.mxu0 0.0
    %1657 = vmatpush1.xpose.msra.mxu0 0.0
    %1658 = vmatprep.subr.mxu0 0.0
    %1659 = vmatpush1.xpose.msra.mxu0 0.0
    %1660 = vmatprep.subr.mxu0 0.0
    %1661 = vmatpush1.xpose.msra.mxu0 0.0
    %1662 = vmatprep.subr.mxu0 0.0
    %1663 = vmatpush1.xpose.msra.mxu0 0.0
    %1664 = vmatprep.subr.mxu0 0.0
    %1665 = vmatpush1.xpose.msra.mxu0 0.0
    %1666 = vmatprep.subr.mxu0 0.0
    %1667 = vmatpush1.xpose.msra.mxu0 0.0
    %1668 = vmatprep.subr.mxu0 0.0
    %1669 = vmatpush1.xpose.msra.mxu0 0.0
    %1670 = vmatprep.subr.mxu0 0.0
    %1671 = vmatpush1.xpose.msra.mxu0 0.0
    %1672 = vmatprep.subr.mxu0 0.0
    %1673 = vmatpush1.xpose.msra.mxu0 0.0
    %1674 = vmatprep.subr.mxu0 0.0
    %1675 = vmatpush1.xpose.msra.mxu0 0.0
    %1676 = vmatprep.subr.mxu0 0.0
    %1677 = vmatpush1.xpose.msra.mxu0 0.0
    %1678 = vmatprep.subr.mxu0 0.0
    %1679 = vmatpush1.xpose.msra.mxu0 0.0
    %1680 = vmatprep.subr.mxu0 0.0
    %1681 = vmatpush1.xpose.msra.mxu0 0.0
    %1682 = vmatprep.subr.mxu0 0.0
    %1683 = vmatpush1.xpose.msra.mxu0 0.0
    %1684 = vmatprep.subr.mxu0 0.0
    %1685 = vmatpush1.xpose.msra.mxu0 0.0
    %1686 = vmatprep.subr.mxu0 0.0
    %1687 = vmatpush1.xpose.msra.mxu0 0.0
    %1688 = vmatprep.subr.mxu0 0.0
    %1689 = vmatpush1.xpose.msra.mxu0 0.0
    %1690 = vmatprep.subr.mxu0 0.0
    %1691 = vmatpush1.xpose.msra.mxu0 0.0
    %1692 = vmatprep.subr.mxu0 0.0
    %1693 = vmatpush1.xpose.msra.mxu0 0.0
    %1694 = vmatprep.subr.mxu0 0.0
    %1695 = vmatpush1.xpose.msra.mxu0 0.0
    %1696 = vmatprep.subr.mxu0 0.0
    %1697 = vmatpush1.xpose.msra.mxu0 0.0
    %1698 = vmatprep.subr.mxu0 0.0
    %1699 = vmatpush1.xpose.msra.mxu0 0.0
    %1700 = vmatprep.subr.mxu0 0.0
    %1701 = vmatpush1.xpose.msra.mxu0 0.0
    %1702 = vmatprep.subr.mxu0 0.0
    %1703 = vmatpush1.xpose.msra.mxu0 0.0
    %1704 = vmatprep.subr.mxu0 0.0
    %1705 = vmatpush1.xpose.msra.mxu0 0.0
    %1706 = vmatprep.subr.mxu0 0.0
    %1707 = vmatpush1.xpose.msra.mxu0 0.0
    %1708 = vmatprep.subr.mxu0 0.0
    %1709 = vmatpush1.xpose.msra.mxu0 0.0
    %1710 = vmatprep.subr.mxu0 0.0
    %1711 = vmatpush1.xpose.msra.mxu0 0.0
    %1712 = vmatprep.subr.mxu0 0.0
    %1713 = vmatpush1.xpose.msra.mxu0 0.0
    %1714 = vmatprep.subr.mxu0 0.0
    %1715 = vmatpush1.xpose.msra.mxu0 0.0
    %1716 = vmatprep.subr.mxu0 0.0
    %1717 = vmatpush1.xpose.msra.mxu0 0.0
    %1718 = vmatprep.mubr.f32.mxu0 0.0
    %1719 = vmatmul.mubr.f32.gmra.mrb[0].mxu0 %v1650
    %v1720 = vpop.f32.mrb[0].mxu0
    %v1721 = vadd.f32 0.0, %v1720
    %v1722 = vpop.f32.mrb[0].mxu0
    %1723 = vdwg.mxu0
    %v1724 = vmul.f32 %v1643, 0.35355338
    %v1725 = vmul.f32 %v1721, 0.35355338
    %v1726 = vsel %vm306, %v1724, -inf
    %1727 = vmax.xlane.f32.xlu0 %v1726
    %v1728 = vpop.xlane.xlu0 %1727
    %v1729 = vsel %vm306, %v1725, -inf
    %1730 = vmax.xlane.f32.xlu0 %v1729
    %v1731 = vpop.xlane.xlu0 %1730
    %v1732 = vsub.f32 %v1724, %v1728
    %v1733 = vsub.f32 %v1725, %v1731
    %v1734 = vmul.f32 %v1732, 1.442695
    %v1735 = vpow.pop %v1734
    %v1736 = vmul.f32 %v1733, 1.442695
    %v1737 = vpow.pop %v1736
    %v1738 = vsel %vm306, %v1735, 0.0
    %1739 = vadd.xlane.f32.xlu0 %v1738
    %v1740 = vpop.xlane.xlu0 %1739
    %v1741 = vsel %vm306, %v1737, 0.0
    %1742 = vadd.xlane.f32.xlu0 %v1741
    %v1743 = vpop.xlane.xlu0 %1742
    %v1744 = vrcp.pop %v1740
    %v1745 = vrcp.pop %v1743
    %v1746 = vmul.f32 %v1740, %v1744
    %v1747 = vmul.f32 %v1743, %v1745
    %v1748 = vsub.f32 2.0, %v1746
    %v1749 = vsub.f32 2.0, %v1747
    %v1750 = vmul.f32 %v1744, %v1748
    %v1751 = vmul.f32 %v1745, %v1749
    %v1752 = vmul.f32 %v1735, %v1750
    %v1753 = vmul.f32 %v1737, %v1751
    %v1754 = vadd.f32 %v1330, %v1752
    %v1755 = vadd.f32 %v1331, %v1753
    %1756 = vrot.lane.b32.xlu0 %v295, 40
    %v1757 = vpop.permute.xlu0 %1756
    %v1760 = vsel %vm306, %v1752, 0
    %1762 = vmatprep.subr.mxu0 0.0
    %1763 = vmatpush1.msra.mxu0 %v1757
    %1764 = vmatprep.subr.mxu0 0.0
    %1765 = vmatpush1.msra.mxu0 0.0
    %1766 = vmatprep.subr.mxu0 0.0
    %1767 = vmatpush1.msra.mxu0 0.0
    %1768 = vmatprep.subr.mxu0 0.0
    %1769 = vmatpush1.msra.mxu0 0.0
    %1770 = vmatprep.subr.mxu0 0.0
    %1771 = vmatpush1.msra.mxu0 0.0
    %1772 = vmatprep.subr.mxu0 0.0
    %1773 = vmatpush1.msra.mxu0 0.0
    %1774 = vmatprep.subr.mxu0 0.0
    %1775 = vmatpush1.msra.mxu0 0.0
    %1776 = vmatprep.subr.mxu0 0.0
    %1777 = vmatpush1.msra.mxu0 0.0
    %1778 = vmatprep.subr.mxu0 0.0
    %1779 = vmatpush1.msra.mxu0 0.0
    %1780 = vmatprep.subr.mxu0 0.0
    %1781 = vmatpush1.msra.mxu0 0.0
    %1782 = vmatprep.subr.mxu0 0.0
    %1783 = vmatpush1.msra.mxu0 0.0
    %1784 = vmatprep.subr.mxu0 0.0
    %1785 = vmatpush1.msra.mxu0 0.0
    %1786 = vmatprep.subr.mxu0 0.0
    %1787 = vmatpush1.msra.mxu0 0.0
    %1788 = vmatprep.subr.mxu0 0.0
    %1789 = vmatpush1.msra.mxu0 0.0
    %1790 = vmatprep.subr.mxu0 0.0
    %1791 = vmatpush1.msra.mxu0 0.0
    %1792 = vmatprep.subr.mxu0 0.0
    %1793 = vmatpush1.msra.mxu0 0.0
    %1794 = vmatprep.subr.mxu0 0.0
    %1795 = vmatpush1.msra.mxu0 0.0
    %1796 = vmatprep.subr.mxu0 0.0
    %1797 = vmatpush1.msra.mxu0 0.0
    %1798 = vmatprep.subr.mxu0 0.0
    %1799 = vmatpush1.msra.mxu0 0.0
    %1800 = vmatprep.subr.mxu0 0.0
    %1801 = vmatpush1.msra.mxu0 0.0
    %1802 = vmatprep.subr.mxu0 0.0
    %1803 = vmatpush1.msra.mxu0 0.0
    %1804 = vmatprep.subr.mxu0 0.0
    %1805 = vmatpush1.msra.mxu0 0.0
    %1806 = vmatprep.subr.mxu0 0.0
    %1807 = vmatpush1.msra.mxu0 0.0
    %1808 = vmatprep.subr.mxu0 0.0
    %1809 = vmatpush1.msra.mxu0 0.0
    %1810 = vmatprep.subr.mxu0 0.0
    %1811 = vmatpush1.msra.mxu0 0.0
    %1812 = vmatprep.subr.mxu0 0.0
    %1813 = vmatpush1.msra.mxu0 0.0
    %1814 = vmatprep.subr.mxu0 0.0
    %1815 = vmatpush1.msra.mxu0 0.0
    %1816 = vmatprep.subr.mxu0 0.0
    %1817 = vmatpush1.msra.mxu0 0.0
    %1818 = vmatprep.subr.mxu0 0.0
    %1819 = vmatpush1.msra.mxu0 0.0
    %1820 = vmatprep.subr.mxu0 0.0
    %1821 = vmatpush1.msra.mxu0 0.0
    %1822 = vmatprep.subr.mxu0 0.0
    %1823 = vmatpush1.msra.mxu0 0.0
    %1824 = vmatprep.subr.mxu0 0.0
    %1825 = vmatpush1.msra.mxu0 0.0
    %1826 = vmatprep.mubr.f32.mxu0 0.0
    %1827 = vmatmul.mubr.f32.gmra.mrb[0].mxu0 %v1760
    %v1828 = vpop.f32.mrb[0].mxu0
    %v1829 = vadd.f32 0.0, %v1828
    %v1830 = vpop.f32.mrb[0].mxu0
    %1831 = vdwg.mxu0
    %1832 = vrot.lane.b32.xlu0 %v300, 40
    %v1833 = vpop.permute.xlu0 %1832
    %v1836 = vsel %vm306, %v1753, 0
    %1838 = vmatprep.subr.mxu0 0.0
    %1839 = vmatpush1.msra.mxu0 %v1833
    %1840 = vmatprep.subr.mxu0 0.0
    %1841 = vmatpush1.msra.mxu0 0.0
    %1842 = vmatprep.subr.mxu0 0.0
    %1843 = vmatpush1.msra.mxu0 0.0
    %1844 = vmatprep.subr.mxu0 0.0
    %1845 = vmatpush1.msra.mxu0 0.0
    %1846 = vmatprep.subr.mxu0 0.0
    %1847 = vmatpush1.msra.mxu0 0.0
    %1848 = vmatprep.subr.mxu0 0.0
    %1849 = vmatpush1.msra.mxu0 0.0
    %1850 = vmatprep.subr.mxu0 0.0
    %1851 = vmatpush1.msra.mxu0 0.0
    %1852 = vmatprep.subr.mxu0 0.0
    %1853 = vmatpush1.msra.mxu0 0.0
    %1854 = vmatprep.subr.mxu0 0.0
    %1855 = vmatpush1.msra.mxu0 0.0
    %1856 = vmatprep.subr.mxu0 0.0
    %1857 = vmatpush1.msra.mxu0 0.0
    %1858 = vmatprep.subr.mxu0 0.0
    %1859 = vmatpush1.msra.mxu0 0.0
    %1860 = vmatprep.subr.mxu0 0.0
    %1861 = vmatpush1.msra.mxu0 0.0
    %1862 = vmatprep.subr.mxu0 0.0
    %1863 = vmatpush1.msra.mxu0 0.0
    %1864 = vmatprep.subr.mxu0 0.0
    %1865 = vmatpush1.msra.mxu0 0.0
    %1866 = vmatprep.subr.mxu0 0.0
    %1867 = vmatpush1.msra.mxu0 0.0
    %1868 = vmatprep.subr.mxu0 0.0
    %1869 = vmatpush1.msra.mxu0 0.0
    %1870 = vmatprep.subr.mxu0 0.0
    %1871 = vmatpush1.msra.mxu0 0.0
    %1872 = vmatprep.subr.mxu0 0.0
    %1873 = vmatpush1.msra.mxu0 0.0
    %1874 = vmatprep.subr.mxu0 0.0
    %1875 = vmatpush1.msra.mxu0 0.0
    %1876 = vmatprep.subr.mxu0 0.0
    %1877 = vmatpush1.msra.mxu0 0.0
    %1878 = vmatprep.subr.mxu0 0.0
    %1879 = vmatpush1.msra.mxu0 0.0
    %1880 = vmatprep.subr.mxu0 0.0
    %1881 = vmatpush1.msra.mxu0 0.0
    %1882 = vmatprep.subr.mxu0 0.0
    %1883 = vmatpush1.msra.mxu0 0.0
    %1884 = vmatprep.subr.mxu0 0.0
    %1885 = vmatpush1.msra.mxu0 0.0
    %1886 = vmatprep.subr.mxu0 0.0
    %1887 = vmatpush1.msra.mxu0 0.0
    %1888 = vmatprep.subr.mxu0 0.0
    %1889 = vmatpush1.msra.mxu0 0.0
    %1890 = vmatprep.subr.mxu0 0.0
    %1891 = vmatpush1.msra.mxu0 0.0
    %1892 = vmatprep.subr.mxu0 0.0
    %1893 = vmatpush1.msra.mxu0 0.0
    %1894 = vmatprep.subr.mxu0 0.0
    %1895 = vmatpush1.msra.mxu0 0.0
    %1896 = vmatprep.subr.mxu0 0.0
    %1897 = vmatpush1.msra.mxu0 0.0
    %1898 = vmatprep.subr.mxu0 0.0
    %1899 = vmatpush1.msra.mxu0 0.0
    %1900 = vmatprep.subr.mxu0 0.0
    %1901 = vmatpush1.msra.mxu0 0.0
    %1902 = vmatprep.mubr.f32.mxu0 0.0
    %1903 = vmatmul.mubr.f32.gmra.mrb[0].mxu0 %v1836
    %v1904 = vpop.f32.mrb[0].mxu0
    %v1905 = vadd.f32 0.0, %v1904
    %v1906 = vpop.f32.mrb[0].mxu0
    %1907 = vdwg.mxu0
    %v1908 = vld [vmem:[#allocation8 + $0x18] sm:$0xff]
    %v1910 = vsel %vm306, %v1829, 0
    %v1913 = vsel %vm306, %v1905, 0
    %1915 = vmatprep.subr.mxu0 0.0
    %1916 = vmatpush1.msra.mxu0 %v1908
    %1917 = vmatprep.subr.mxu0 0.0
    %1918 = vmatpush1.msra.mxu0 0.0
    %1919 = vmatprep.subr.mxu0 0.0
    %1920 = vmatpush1.msra.mxu0 0.0
    %1921 = vmatprep.subr.mxu0 0.0
    %1922 = vmatpush1.msra.mxu0 0.0
    %1923 = vmatprep.subr.mxu0 0.0
    %1924 = vmatpush1.msra.mxu0 0.0
    %1925 = vmatprep.subr.mxu0 0.0
    %1926 = vmatpush1.msra.mxu0 0.0
    %1927 = vmatprep.subr.mxu0 0.0
    %1928 = vmatpush1.msra.mxu0 0.0
    %1929 = vmatprep.subr.mxu0 0.0
    %1930 = vmatpush1.msra.mxu0 0.0
    %1931 = vmatprep.subr.mxu0 0.0
    %1932 = vmatpush1.msra.mxu0 0.0
    %1933 = vmatprep.subr.mxu0 0.0
    %1934 = vmatpush1.msra.mxu0 0.0
    %1935 = vmatprep.subr.mxu0 0.0
    %1936 = vmatpush1.msra.mxu0 0.0
    %1937 = vmatprep.subr.mxu0 0.0
    %1938 = vmatpush1.msra.mxu0 0.0
    %1939 = vmatprep.subr.mxu0 0.0
    %1940 = vmatpush1.msra.mxu0 0.0
    %1941 = vmatprep.subr.mxu0 0.0
    %1942 = vmatpush1.msra.mxu0 0.0
    %1943 = vmatprep.subr.mxu0 0.0
    %1944 = vmatpush1.msra.mxu0 0.0
    %1945 = vmatprep.subr.mxu0 0.0
    %1946 = vmatpush1.msra.mxu0 0.0
    %1947 = vmatprep.subr.mxu0 0.0
    %1948 = vmatpush1.msra.mxu0 0.0
    %1949 = vmatprep.subr.mxu0 0.0
    %1950 = vmatpush1.msra.mxu0 0.0
    %1951 = vmatprep.subr.mxu0 0.0
    %1952 = vmatpush1.msra.mxu0 0.0
    %1953 = vmatprep.subr.mxu0 0.0
    %1954 = vmatpush1.msra.mxu0 0.0
    %1955 = vmatprep.subr.mxu0 0.0
    %1956 = vmatpush1.msra.mxu0 0.0
    %1957 = vmatprep.subr.mxu0 0.0
    %1958 = vmatpush1.msra.mxu0 0.0
    %1959 = vmatprep.subr.mxu0 0.0
    %1960 = vmatpush1.msra.mxu0 0.0
    %1961 = vmatprep.subr.mxu0 0.0
    %1962 = vmatpush1.msra.mxu0 0.0
    %1963 = vmatprep.subr.mxu0 0.0
    %1964 = vmatpush1.msra.mxu0 0.0
    %1965 = vmatprep.subr.mxu0 0.0
    %1966 = vmatpush1.msra.mxu0 0.0
    %1967 = vmatprep.subr.mxu0 0.0
    %1968 = vmatpush1.msra.mxu0 0.0
    %1969 = vmatprep.subr.mxu0 0.0
    %1970 = vmatpush1.msra.mxu0 0.0
    %1971 = vmatprep.subr.mxu0 0.0
    %1972 = vmatpush1.msra.mxu0 0.0
    %1973 = vmatprep.subr.mxu0 0.0
    %1974 = vmatpush1.msra.mxu0 0.0
    %1975 = vmatprep.subr.mxu0 0.0
    %1976 = vmatpush1.msra.mxu0 0.0
    %1977 = vmatprep.subr.mxu0 0.0
    %1978 = vmatpush1.msra.mxu0 0.0
    %1979 = vmatprep.mubr.f32.mxu0 0.0
    %1980 = vmatmul.mubr.f32.gmra.mrb[0].mxu0 %v1910
    %v1981 = vpop.f32.mrb[0].mxu0
    %v1982 = vadd.f32 0.0, %v1981
    %v1983 = vpop.f32.mrb[0].mxu0
    %1984 = vmatprep.mubr.f32.mxu0 0.0
    %1985 = vmatmul.mubr.f32.gmra.mrb[0].mxu0 %v1913
    %v1986 = vpop.f32.mrb[0].mxu0
    %v1987 = vadd.f32 0.0, %v1986
    %v1988 = vpop.f32.mrb[0].mxu0
    %1989 = vdwg.mxu0
    %v1990 = vadd.f32 %v1566, %v1982
    %v1991 = vadd.f32 %v1567, %v1987
    %v1992 = vld [vmem:[#allocation10] sm:$0x1]
    %v1994 = vlaneseq
    %v1995 = vshrl.u32 %v1994, 7
    %v1996 = vsub.s32 0, %v1995
    %v1997 = vrot.slane %v1992, %v1996
    %v1999 = vadd.f32 %v1990, %v1997
    %v2000 = vadd.f32 %v1991, %v1997
    %v2001 = vmul.f32 %v1754, 0.25
    %v2002 = vmul.f32 %v1755, 0.25
    %2003 = vst.msk [vmem:[#allocation24] sm:$0xff] %vm306, %v2001
    %2004 = vst.msk [vmem:[#allocation24 + $0x8] sm:$0xff] %vm306, %v2002
    %v2005 = vadd.f32 %v208, %v1999
    %v2006 = vadd.f32 %v209, %v2000
    %v2007 = vld [vmem:[#allocation17] sm:$0x1]
    %v2008 = vld [vmem:[#allocation19] sm:$0x1]
    %v2009 = vsel %vm221, %v2005, 0.0
    %2010 = vadd.xlane.f32.xlu0 %v2009
    %v2011 = vpop.xlane.xlu0 %2010
    %v2012 = vsel %vm221, %v2006, 0.0
    %2013 = vadd.xlane.f32.xlu0 %v2012
    %v2014 = vpop.xlane.xlu0 %2013
    %v2015 = vrcp.pop 32.0
    %v2016 = vmul.f32 %v2011, %v2015
    %v2017 = vmul.f32 %v2014, %v2015
    %v2018 = vsub.f32 %v2005, %v2016
    %v2019 = vsub.f32 %v2006, %v2017
    %v2020 = vmul.f32 %v2018, %v2018
    %v2021 = vmul.f32 %v2019, %v2019
    %v2022 = vsel %vm221, %v2020, 0.0
    %2023 = vadd.xlane.f32.xlu0 %v2022
    %v2024 = vpop.xlane.xlu0 %2023
    %v2025 = vsel %vm221, %v2021, 0.0
    %2026 = vadd.xlane.f32.xlu0 %v2025
    %v2027 = vpop.xlane.xlu0 %2026
    %v2028 = vmul.f32 %v2024, %v2015
    %v2029 = vmul.f32 %v2027, %v2015
    %v2030 = vadd.f32 %v2028, 1e-06
    %v2031 = vadd.f32 %v2029, 1e-06
    %v2032 = vrsqrt.pop %v2030
    %v2033 = vrsqrt.pop %v2031
    %v2034 = vmul.f32 %v2018, %v2032
    %v2035 = vmul.f32 %v2019, %v2033
    %v2037 = vlaneseq
    %v2038 = vshrl.u32 %v2037, 7
    %v2039 = vsub.s32 0, %v2038
    %v2040 = vrot.slane %v2007, %v2039
    %v2042 = vmul.f32 %v2034, %v2040
    %v2043 = vmul.f32 %v2035, %v2040
    %v2045 = vlaneseq
    %v2046 = vshrl.u32 %v2045, 7
    %v2047 = vsub.s32 0, %v2046
    %v2048 = vrot.slane %v2008, %v2047
    %v2050 = vadd.f32 %v2042, %v2048
    %v2051 = vadd.f32 %v2043, %v2048
    %v2052 = vld [vmem:[#allocation11] sm:$0xff]
    %v2053 = vld [vmem:[#allocation11 + $0x8] sm:$0xff]
    %v2054 = vld [vmem:[#allocation11 + $0x10] sm:$0xff]
    %v2055 = vld [vmem:[#allocation11 + $0x18] sm:$0xff]
    %v2056 = vld [vmem:[#allocation13] sm:$0x1]
    %v2058 = vlaneseq
    %v2059 = vshrl.u32 %v2058, 7
    %v2060 = vsub.s32 0, %v2059
    %v2061 = vrot.slane %v2056, %v2060
    %v2064 = vsel %vm221, %v2050, 0
    %v2067 = vsel %vm221, %v2051, 0
    %2069 = vmatprep.subr.mxu0 0.0
    %2070 = vmatpush1.msra.mxu0 %v2052
    %2071 = vmatprep.subr.mxu0 0.0
    %2072 = vmatpush1.msra.mxu0 %v2053
    %2073 = vmatprep.subr.mxu0 0.0
    %2074 = vmatpush1.msra.mxu0 %v2054
    %2075 = vmatprep.subr.mxu0 0.0
    %2076 = vmatpush1.msra.mxu0 %v2055
    %2077 = vmatprep.subr.mxu0 0.0
    %2078 = vmatpush1.msra.mxu0 0.0
    %2079 = vmatprep.subr.mxu0 0.0
    %2080 = vmatpush1.msra.mxu0 0.0
    %2081 = vmatprep.subr.mxu0 0.0
    %2082 = vmatpush1.msra.mxu0 0.0
    %2083 = vmatprep.subr.mxu0 0.0
    %2084 = vmatpush1.msra.mxu0 0.0
    %2085 = vmatprep.subr.mxu0 0.0
    %2086 = vmatpush1.msra.mxu0 0.0
    %2087 = vmatprep.subr.mxu0 0.0
    %2088 = vmatpush1.msra.mxu0 0.0
    %2089 = vmatprep.subr.mxu0 0.0
    %2090 = vmatpush1.msra.mxu0 0.0
    %2091 = vmatprep.subr.mxu0 0.0
    %2092 = vmatpush1.msra.mxu0 0.0
    %2093 = vmatprep.subr.mxu0 0.0
    %2094 = vmatpush1.msra.mxu0 0.0
    %2095 = vmatprep.subr.mxu0 0.0
    %2096 = vmatpush1.msra.mxu0 0.0
    %2097 = vmatprep.subr.mxu0 0.0
    %2098 = vmatpush1.msra.mxu0 0.0
    %2099 = vmatprep.subr.mxu0 0.0
    %2100 = vmatpush1.msra.mxu0 0.0
    %2101 = vmatprep.subr.mxu0 0.0
    %2102 = vmatpush1.msra.mxu0 0.0
    %2103 = vmatprep.subr.mxu0 0.0
    %2104 = vmatpush1.msra.mxu0 0.0
    %2105 = vmatprep.subr.mxu0 0.0
    %2106 = vmatpush1.msra.mxu0 0.0
    %2107 = vmatprep.subr.mxu0 0.0
    %2108 = vmatpush1.msra.mxu0 0.0
    %2109 = vmatprep.subr.mxu0 0.0
    %2110 = vmatpush1.msra.mxu0 0.0
    %2111 = vmatprep.subr.mxu0 0.0
    %2112 = vmatpush1.msra.mxu0 0.0
    %2113 = vmatprep.subr.mxu0 0.0
    %2114 = vmatpush1.msra.mxu0 0.0
    %2115 = vmatprep.subr.mxu0 0.0
    %2116 = vmatpush1.msra.mxu0 0.0
    %2117 = vmatprep.subr.mxu0 0.0
    %2118 = vmatpush1.msra.mxu0 0.0
    %2119 = vmatprep.subr.mxu0 0.0
    %2120 = vmatpush1.msra.mxu0 0.0
    %2121 = vmatprep.subr.mxu0 0.0
    %2122 = vmatpush1.msra.mxu0 0.0
    %2123 = vmatprep.subr.mxu0 0.0
    %2124 = vmatpush1.msra.mxu0 0.0
    %2125 = vmatprep.subr.mxu0 0.0
    %2126 = vmatpush1.msra.mxu0 0.0
    %2127 = vmatprep.subr.mxu0 0.0
    %2128 = vmatpush1.msra.mxu0 0.0
    %2129 = vmatprep.subr.mxu0 0.0
    %2130 = vmatpush1.msra.mxu0 0.0
    %2131 = vmatprep.subr.mxu0 0.0
    %2132 = vmatpush1.msra.mxu0 0.0
    %2133 = vmatprep.mubr.f32.mxu0 0.0
    %2134 = vmatmul.mubr.f32.gmra.mrb[0].mxu0 %v2064
    %v2135 = vpop.f32.mrb[0].mxu0
    %v2136 = vadd.f32 %v2061, %v2135
    %v2137 = vpop.f32.mrb[0].mxu0
    %2138 = vmatprep.mubr.f32.mxu0 0.0
    %2139 = vmatmul.mubr.f32.gmra.mrb[0].mxu0 %v2067
    %v2140 = vpop.f32.mrb[0].mxu0
    %v2141 = vadd.f32 %v2061, %v2140
    %v2142 = vpop.f32.mrb[0].mxu0
    %2143 = vdwg.mxu0
    %v2144 = vmax.f32 %v2136, 0.0
    %v2145 = vmax.f32 %v2141, 0.0
    %v2146 = vld [vmem:[#allocation14] sm:$0xff]
    %v2147 = vld [vmem:[#allocation14 + $0x8] sm:$0xff]
    %v2148 = vld [vmem:[#allocation14 + $0x10] sm:$0xff]
    %v2149 = vld [vmem:[#allocation14 + $0x18] sm:$0xff]
    %v2150 = vld [vmem:[#allocation14 + $0x20] sm:$0xff]
    %v2151 = vld [vmem:[#allocation14 + $0x28] sm:$0xff]
    %v2152 = vld [vmem:[#allocation14 + $0x30] sm:$0xff]
    %v2153 = vld [vmem:[#allocation14 + $0x38] sm:$0xff]
    %v2154 = vld [vmem:[#allocation16] sm:$0x1]
    %v2156 = vlaneseq
    %v2157 = vshrl.u32 %v2156, 7
    %v2158 = vsub.s32 0, %v2157
    %v2159 = vrot.slane %v2154, %v2158
    %vm2161 = vcmask 523264
    %v2163 = vsel %vm2161, %v2144, 0
    %v2166 = vsel %vm2161, %v2145, 0
    %2168 = vmatprep.subr.mxu0 0.0
    %2169 = vmatpush1.msra.mxu0 %v2146
    %2170 = vmatprep.subr.mxu0 0.0
    %2171 = vmatpush1.msra.mxu0 %v2147
    %2172 = vmatprep.subr.mxu0 0.0
    %2173 = vmatpush1.msra.mxu0 %v2148
    %2174 = vmatprep.subr.mxu0 0.0
    %2175 = vmatpush1.msra.mxu0 %v2149
    %2176 = vmatprep.subr.mxu0 0.0
    %2177 = vmatpush1.msra.mxu0 %v2150
    %2178 = vmatprep.subr.mxu0 0.0
    %2179 = vmatpush1.msra.mxu0 %v2151
    %2180 = vmatprep.subr.mxu0 0.0
    %2181 = vmatpush1.msra.mxu0 %v2152
    %2182 = vmatprep.subr.mxu0 0.0
    %2183 = vmatpush1.msra.mxu0 %v2153
    %2184 = vmatprep.subr.mxu0 0.0
    %2185 = vmatpush1.msra.mxu0 0.0
    %2186 = vmatprep.subr.mxu0 0.0
    %2187 = vmatpush1.msra.mxu0 0.0
    %2188 = vmatprep.subr.mxu0 0.0
    %2189 = vmatpush1.msra.mxu0 0.0
    %2190 = vmatprep.subr.mxu0 0.0
    %2191 = vmatpush1.msra.mxu0 0.0
    %2192 = vmatprep.subr.mxu0 0.0
    %2193 = vmatpush1.msra.mxu0 0.0
    %2194 = vmatprep.subr.mxu0 0.0
    %2195 = vmatpush1.msra.mxu0 0.0
    %2196 = vmatprep.subr.mxu0 0.0
    %2197 = vmatpush1.msra.mxu0 0.0
    %2198 = vmatprep.subr.mxu0 0.0
    %2199 = vmatpush1.msra.mxu0 0.0
    %2200 = vmatprep.subr.mxu0 0.0
    %2201 = vmatpush1.msra.mxu0 0.0
    %2202 = vmatprep.subr.mxu0 0.0
    %2203 = vmatpush1.msra.mxu0 0.0
    %2204 = vmatprep.subr.mxu0 0.0
    %2205 = vmatpush1.msra.mxu0 0.0
    %2206 = vmatprep.subr.mxu0 0.0
    %2207 = vmatpush1.msra.mxu0 0.0
    %2208 = vmatprep.subr.mxu0 0.0
    %2209 = vmatpush1.msra.mxu0 0.0
    %2210 = vmatprep.subr.mxu0 0.0
    %2211 = vmatpush1.msra.mxu0 0.0
    %2212 = vmatprep.subr.mxu0 0.0
    %2213 = vmatpush1.msra.mxu0 0.0
    %2214 = vmatprep.subr.mxu0 0.0
    %2215 = vmatpush1.msra.mxu0 0.0
    %2216 = vmatprep.subr.mxu0 0.0
    %2217 = vmatpush1.msra.mxu0 0.0
    %2218 = vmatprep.subr.mxu0 0.0
    %2219 = vmatpush1.msra.mxu0 0.0
    %2220 = vmatprep.subr.mxu0 0.0
    %2221 = vmatpush1.msra.mxu0 0.0
    %2222 = vmatprep.subr.mxu0 0.0
    %2223 = vmatpush1.msra.mxu0 0.0
    %2224 = vmatprep.subr.mxu0 0.0
    %2225 = vmatpush1.msra.mxu0 0.0
    %2226 = vmatprep.subr.mxu0 0.0
    %2227 = vmatpush1.msra.mxu0 0.0
    %2228 = vmatprep.subr.mxu0 0.0
    %2229 = vmatpush1.msra.mxu0 0.0
    %2230 = vmatprep.subr.mxu0 0.0
    %2231 = vmatpush1.msra.mxu0 0.0
    %2232 = vmatprep.mubr.f32.mxu0 0.0
    %2233 = vmatmul.mubr.f32.gmra.mrb[0].mxu0 %v2163
    %v2234 = vpop.f32.mrb[0].mxu0
    %v2235 = vadd.f32 %v2159, %v2234
    %v2236 = vpop.f32.mrb[0].mxu0
    %2237 = vmatprep.mubr.f32.mxu0 0.0
    %2238 = vmatmul.mubr.f32.gmra.mrb[0].mxu0 %v2166
    %v2239 = vpop.f32.mrb[0].mxu0
    %v2240 = vadd.f32 %v2159, %v2239
    %v2241 = vpop.f32.mrb[0].mxu0
    %2242 = vdwg.mxu0
    %v2243 = vadd.f32 %v2050, %v2235
    %v2244 = vadd.f32 %v2051, %v2240
    %v2245 = vld [vmem:[#allocation20] sm:$0x1]
    %v2246 = vld [vmem:[#allocation22] sm:$0x1]
    %v2247 = vsel %vm221, %v2243, 0.0
    %2248 = vadd.xlane.f32.xlu0 %v2247
    %v2249 = vpop.xlane.xlu0 %2248
    %v2250 = vsel %vm221, %v2244, 0.0
    %2251 = vadd.xlane.f32.xlu0 %v2250
    %v2252 = vpop.xlane.xlu0 %2251
    %v2253 = vmul.f32 %v2249, %v2015
    %v2254 = vmul.f32 %v2252, %v2015
    %v2255 = vsub.f32 %v2243, %v2253
    %v2256 = vsub.f32 %v2244, %v2254
    %v2257 = vmul.f32 %v2255, %v2255
    %v2258 = vmul.f32 %v2256, %v2256
    %v2259 = vsel %vm221, %v2257, 0.0
    %2260 = vadd.xlane.f32.xlu0 %v2259
    %v2261 = vpop.xlane.xlu0 %2260
    %v2262 = vsel %vm221, %v2258, 0.0
    %2263 = vadd.xlane.f32.xlu0 %v2262
    %v2264 = vpop.xlane.xlu0 %2263
    %v2265 = vmul.f32 %v2261, %v2015
    %v2266 = vmul.f32 %v2264, %v2015
    %v2267 = vadd.f32 %v2265, 1e-06
    %v2268 = vadd.f32 %v2266, 1e-06
    %v2269 = vrsqrt.pop %v2267
    %v2270 = vrsqrt.pop %v2268
    %v2271 = vmul.f32 %v2255, %v2269
    %v2272 = vmul.f32 %v2256, %v2270
    %v2274 = vlaneseq
    %v2275 = vshrl.u32 %v2274, 7
    %v2276 = vsub.s32 0, %v2275
    %v2277 = vrot.slane %v2245, %v2276
    %v2279 = vmul.f32 %v2271, %v2277
    %v2280 = vmul.f32 %v2272, %v2277
    %v2282 = vlaneseq
    %v2283 = vshrl.u32 %v2282, 7
    %v2284 = vsub.s32 0, %v2283
    %v2285 = vrot.slane %v2246, %v2284
    %v2287 = vadd.f32 %v2279, %v2285
    %v2288 = vadd.f32 %v2280, %v2285
    %2289 = vst.msk [vmem:[#allocation23] sm:$0xff] %vm221, %v2287
    %2290 = vst.msk [vmem:[#allocation23 + $0x8] sm:$0xff] %vm221, %v2288
    // Predicated region
    $region106: #{tpu_custom_call.1} parent=1 // pred_check
      _
    $region107: #{tpu_custom_call.1} parent=1 // pred_check_branch
      %2292 = sbr.rel (0) target = $region109
    $region108: #{tpu_custom_call.1} parent=1 // pred_region
      %s2294 = ssub.s32 256, 256
      %2295 = vsyncadd [#allocation4], %s2294
      %s2296 = sshll.u32 [#allocation23], 4
      %s2297 = int_to_ptr.vmem [resolvable:$true] %s2296
      %2302 = dma.vmem_to_hbm [thread:$0]  %s2297, 256, %s13, [#allocation4], 128, 128, 8
    $region109: #{tpu_custom_call.1} parent=1 // pred_fallthru
      _
    // Predicated region
    $region110: #{tpu_custom_call.1} parent=1 // pred_check
      _
    $region111: #{tpu_custom_call.1} parent=1 // pred_check_branch
      %2304 = sbr.rel (0) target = $region113
    $region112: #{tpu_custom_call.1} parent=1 // pred_region
      %s2306 = ssub.s32 256, 256
      %2307 = vsyncadd [#allocation25], %s2306
      %s2308 = sshll.u32 [#allocation24], 4
      %s2309 = int_to_ptr.vmem [resolvable:$true] %s2308
      %2314 = dma.vmem_to_hbm [thread:$0]  %s2309, 256, %s14, [#allocation25], 128, 128, 8
    $region113: #{tpu_custom_call.1} parent=1 // pred_fallthru
      _
    // Predicated region
    $region114: #{tpu_custom_call.1} parent=1 // pred_check
      _
    $region115: #{tpu_custom_call.1} parent=1 // pred_check_branch
      %2316 = sbr.rel (0) target = $region117
    $region116: #{tpu_custom_call.1} parent=1 // pred_region
      %2317 = dma.done [#allocation4], 256
    $region117: #{tpu_custom_call.1} parent=1 // pred_fallthru
      _
    // Predicated region
    $region118: #{tpu_custom_call.1} parent=1 // pred_check
      _
    $region119: #{tpu_custom_call.1} parent=1 // pred_check_branch
      %2319 = sbr.rel (0) target = $region121
    $region120: #{tpu_custom_call.1} parent=1 // pred_region
      %2320 = dma.done [#allocation25], 256
    $region121: #{tpu_custom_call.1} parent=1 // pred_fallthru
      _
    %2321 = vsyncpa [#allocation3], 1
    %2322 = vsyncpa [#allocation6], 1
    %2323 = vsyncpa [#allocation9], 1
    %2324 = vsyncpa [#allocation12], 1
    %2325 = vsyncpa [#allocation15], 1
    %2326 = vsyncpa [#allocation18], 1
    %2327 = vsyncpa [#allocation21], 1
    %2328 = vsyncpa [#allocation4], 1
    %2329 = vsyncpa [#allocation25], 1

</llo_original>
